<compile_context>
chip_gen: v7x
topology: tpu7x:2x2x1
jax: 0.10.0
libtpu: 0.0.40
codegen_flags: <defaults>
</compile_context>

<pallas_src>
import functools

import jax
import jax.numpy as jnp
from jax import lax
from jax.experimental import pallas as pl
from jax.experimental.pallas import tpu as pltpu


# -----------------------------------------------------------------------------
# Fused kernel: 3x3 conv (im2col -> one MXU matmul) + batch stats + BN + ReLU.
# -----------------------------------------------------------------------------
def _conv_bn_relu_kernel(x_ref, w_ref, b_ref, gamma_ref, beta_ref,   # inputs
                         out_ref,                                    # output
                         pad_ref, col_ref, sum_ref, sq_ref,          # scratch
                         *, N, H, W, Cin, Cout, K, pad, eps):
    # x_ref    : (1, H, W, Cin)      f32   one sample (NHWC view of the input)
    # w_ref    : (Cout, K*K*Cin)     bf16  im2col-ordered conv taps (resident)
    # b_ref    : (Cout, 1)           f32   conv bias                (resident)
    # gamma/beta_ref : (Cout, 1)     f32   BN affine params         (resident)
    # out_ref  : (N, Cout, H*W)      f32   resident output block (whole array)
    # pad_ref  : (H+2p, W+2p, Cin)   f32   zero-halo staging tile   (VMEM)
    # col_ref  : (H*W, K*K*Cin)      f32   im2col buffer            (VMEM)
    # sum_ref, sq_ref : (Cout, 1)    f32   channel sum / sumsq accumulators
    n = pl.program_id(0)
    HW = H * W

    # One-time init: zero the halo (interior is overwritten every step) and the
    # stats accumulators.  Grid axis is "arbitrary" -> single core owns scratch.
    @pl.when(n == 0)
    def _init():
        pad_ref[...] = jnp.zeros_like(pad_ref)
        sum_ref[...] = jnp.zeros_like(sum_ref)
        sq_ref[...] = jnp.zeros_like(sq_ref)

    # Stage the sample into the padded buffer (halo already zero).
    pad_ref[pad:pad + H, pad:pad + W, :] = x_ref[0]

    # Build the im2col buffer: K*K shifted copies of the input concatenated on
    # the lane axis (vld/vst slots); the contraction becomes one MXU issue.
    for dy in range(K):
        for dx in range(K):
            tap = dy * K + dx
            piece = pad_ref[dy:dy + H, dx:dx + W, :]               # (H, W, Cin)
            col_ref[:, tap * Cin:(tap + 1) * Cin] = piece.reshape(HW, Cin)

    # Single MXU matmul over the full K*K*Cin contraction (bf16 in, f32 acc).
    col_bf16 = col_ref[...].astype(jnp.bfloat16)
    acc = lax.dot_general(
        w_ref[...], col_bf16,
        dimension_numbers=(((1,), (1,)), ((), ())),                # w @ col.T
        preferred_element_type=jnp.float32,
    ) + b_ref[...]                                                 # (Cout, HW)

    # Park this sample's conv output in the resident output block and
    # accumulate channel statistics (lane reductions, f32).
    out_ref[n] = acc
    sum_ref[...] += jnp.sum(acc, axis=1, keepdims=True)
    sq_ref[...] += jnp.sum(acc * acc, axis=1, keepdims=True)

    # Last step: finalize batch stats, apply BN + ReLU in-VMEM, write back once.
    @pl.when(n == N - 1)
    def _finalize():
        inv_count = jnp.float32(1.0 / (N * HW))
        mean = sum_ref[...] * inv_count                            # (Cout, 1)
        # Clamp: E[x^2] - mean^2 can go slightly negative from cancellation.
        var = jnp.maximum(sq_ref[...] * inv_count - mean * mean, 0.0)
        scale = gamma_ref[...] * lax.rsqrt(var + jnp.float32(eps)) # (Cout, 1)
        shift = beta_ref[...] - mean * scale
        y = out_ref[...]                                           # (N, Cout, HW)
        out_ref[...] = jnp.maximum(y * scale[None] + shift[None], 0.0)


# -----------------------------------------------------------------------------
# Wrapper
# -----------------------------------------------------------------------------
def conv_block_forward(x_nchw, w_oihw, conv_bias, bn_gamma, bn_beta, *, eps=1e-5):
    """ConvBlock forward.  x_nchw: (N, Cin, H, W) f32 -> (N, Cout, H, W) f32."""
    N, Cin, H, W = x_nchw.shape
    Cout, _, K, _ = w_oihw.shape
    pad = K // 2
    Hp, Wp = H + 2 * pad, W + 2 * pad
    HW = H * W
    KKC = K * K * Cin

    # One layout pass on the (small) input tensor; padding is done in-kernel
    # and the output is written lane-dense NCHW(flat) directly, so there is no
    # wrapper pad and no output-side transpose.
    # TODO(synk): fold this remaining NCHW->NHWC input relayout into the kernel
    # (per-tile XLU transpose) to remove the last wrapper HBM pass.
    x_nhwc = jnp.transpose(x_nchw, (0, 2, 3, 1))

    # (Cout, Cin, K, K) -> (Cout, K*K*Cin), row order (dy, dx, ci); bf16 for MXU.
    w_rows = jnp.transpose(w_oihw, (0, 2, 3, 1)).reshape(Cout, KKC).astype(jnp.bfloat16)
    b_col = conv_bias.reshape(Cout, 1).astype(jnp.float32)
    g_col = bn_gamma.reshape(Cout, 1).astype(jnp.float32)
    be_col = bn_beta.reshape(Cout, 1).astype(jnp.float32)

    fused = pl.pallas_call(
        functools.partial(_conv_bn_relu_kernel,
                          N=N, H=H, W=W, Cin=Cin, Cout=Cout, K=K, pad=pad,
                          eps=float(eps)),
        grid=(N,),
        in_specs=[
            pl.BlockSpec((1, H, W, Cin), lambda n: (n, 0, 0, 0)),
            pl.BlockSpec((Cout, KKC), lambda n: (0, 0)),
            pl.BlockSpec((Cout, 1), lambda n: (0, 0)),
            pl.BlockSpec((Cout, 1), lambda n: (0, 0)),
            pl.BlockSpec((Cout, 1), lambda n: (0, 0)),
        ],
        # Resident output block (whole array): written back to HBM once.
        out_specs=pl.BlockSpec((N, Cout, HW), lambda n: (0, 0, 0)),
        out_shape=jax.ShapeDtypeStruct((N, Cout, HW), jnp.float32),
        scratch_shapes=[
            pltpu.VMEM((Hp, Wp, Cin), jnp.float32),   # zero-halo staging tile
            pltpu.VMEM((HW, KKC), jnp.float32),       # im2col buffer
            pltpu.VMEM((Cout, 1), jnp.float32),       # channel sum
            pltpu.VMEM((Cout, 1), jnp.float32),       # channel sumsq
        ],
        compiler_params=pltpu.CompilerParams(
            dimension_semantics=("arbitrary",),        # batch-resident accumulation
            vmem_limit_bytes=32 * 1024 * 1024,
        ),
    )
    # TODO(synk): for large N*Cout*H*W, fall back to a two-pass (conv+stats /
    # BN+ReLU) path with spatial tiling so the resident output fits VMEM (64 MiB
    # on v7x).
    out_flat = fused(x_nhwc, w_rows, b_col, g_col, be_col)

    # Free bitcast back to NCHW.
    return out_flat.reshape(N, Cout, H, W)


# -----------------------------------------------------------------------------
# Pure-JAX reference (PyTorch semantics, f32)
# -----------------------------------------------------------------------------
def _reference(x_nchw, w_oihw, conv_bias, bn_gamma, bn_beta, eps=1e-5):
    y = lax.conv_general_dilated(
        x_nchw, w_oihw, window_strides=(1, 1), padding=((1, 1), (1, 1)),
        dimension_numbers=("NCHW", "OIHW", "NCHW"),
    ) + conv_bias[None, :, None, None]
    mean = y.mean(axis=(0, 2, 3))
    var = y.var(axis=(0, 2, 3))  # biased, like BN training mode
    yn = (y - mean[None, :, None, None]) / jnp.sqrt(var + eps)[None, :, None, None]
    yn = yn * bn_gamma[None, :, None, None] + bn_beta[None, :, None, None]
    return jnp.maximum(yn, 0.0)


if __name__ == "__main__":
    N, Cin, Cout, H, W, K = 2, 4, 8, 16, 16, 3

    key = jax.random.PRNGKey(0)
    k1, k2, k3 = jax.random.split(key, 3)

    x = jax.random.normal(k1, (N, Cin, H, W), jnp.float32)
    # Conv2d params (deterministic synthetic init, PyTorch OIHW layout).
    w = jax.random.normal(k2, (Cout, Cin, K, K), jnp.float32) * 0.1
    b = jax.random.normal(k3, (Cout,), jnp.float32) * 0.1
    # BatchNorm2d default init: weight=1, bias=0.
    gamma = jnp.ones((Cout,), jnp.float32)
    beta = jnp.zeros((Cout,), jnp.float32)

    fwd = jax.jit(conv_block_forward)
    out = jax.block_until_ready(fwd(x, w, b, gamma, beta))

    ref = _reference(x, w, b, gamma, beta)
    assert out.shape == (N, Cout, H, W)
    # Conv runs with bf16 MXU inputs (f32 accumulation; stats/BN in f32), so we
    # compare against the f32 reference with a bf16-appropriate tolerance.
    assert jnp.allclose(out, ref, atol=5e-2, rtol=5e-2), "mismatch vs reference"

    print("KERNEL_OK")
</pallas_src>

<mosaic_0001>
module attributes {stable_mosaic.version = 11 : i64} {
  func.func @_conv_bn_relu_kernel(%arg0: i32, %arg1: memref<1x16x16x4xf32, #tpu.memory_space<vmem>>, %arg2: memref<8x36xbf16, #tpu.memory_space<vmem>>, %arg3: memref<8x1xf32, #tpu.memory_space<vmem>>, %arg4: memref<8x1xf32, #tpu.memory_space<vmem>>, %arg5: memref<8x1xf32, #tpu.memory_space<vmem>>, %arg6: memref<2x8x256xf32, #tpu.memory_space<vmem>>, %arg7: memref<18x18x4xf32, #tpu.memory_space<vmem>>, %arg8: memref<256x36xf32, #tpu.memory_space<vmem>>, %arg9: memref<8x1xf32, #tpu.memory_space<vmem>>, %arg10: memref<8x1xf32, #tpu.memory_space<vmem>>) attributes {dimension_semantics = [#tpu.dimension_semantics<arbitrary>], iteration_bounds = array<i64: 2>, scalar_prefetch = 0 : i64, scratch_operands = 4 : i64, tpu.core_type = #tpu.core_type<tc>, window_params = [{transform_indices = @transform_0, window_bounds = array<i64: 1, 16, 16, 4>}, {pipeline_mode = #tpu.pipeline_mode<synchronous>, transform_indices = @transform_1, window_bounds = array<i64: 8, 36>}, {pipeline_mode = #tpu.pipeline_mode<synchronous>, transform_indices = @transform_2, window_bounds = array<i64: 8, 1>}, {pipeline_mode = #tpu.pipeline_mode<synchronous>, transform_indices = @transform_3, window_bounds = array<i64: 8, 1>}, {pipeline_mode = #tpu.pipeline_mode<synchronous>, transform_indices = @transform_4, window_bounds = array<i64: 8, 1>}, {pipeline_mode = #tpu.pipeline_mode<synchronous>, transform_indices = @transform_5, window_bounds = array<i64: 2, 8, 256>}]} {
    %c0_i32 = arith.constant 0 : i32
    %0 = arith.cmpi eq, %arg0, %c0_i32 : i32
    %1 = arith.extui %0 : i1 to i32
    %c0_i32_0 = arith.constant 0 : i32
    %2 = arith.cmpi ne, %1, %c0_i32_0 : i32
    scf.if %2 {
      %cst_61 = arith.constant 0.000000e+00 : f32
      %58 = vector.broadcast %cst_61 : f32 to vector<18x18x4xf32>
      %c0_62 = arith.constant 0 : index
      %c0_63 = arith.constant 0 : index
      %c0_64 = arith.constant 0 : index
      %59 = vector.load %arg7[%c0_62, %c0_63, %c0_64] : memref<18x18x4xf32, #tpu.memory_space<vmem>>, vector<18x18x4xf32>
      tpu.vector_store %arg7[%c0_62, %c0_63, %c0_64], %58 {strides = array<i32>} : memref<18x18x4xf32, #tpu.memory_space<vmem>>, vector<18x18x4xf32>,
      %cst_65 = arith.constant 0.000000e+00 : f32
      %60 = vector.broadcast %cst_65 : f32 to vector<8x1xf32>
      %c0_66 = arith.constant 0 : index
      %c0_67 = arith.constant 0 : index
      %61 = vector.load %arg9[%c0_66, %c0_67] : memref<8x1xf32, #tpu.memory_space<vmem>>, vector<8x1xf32>
      tpu.vector_store %arg9[%c0_66, %c0_67], %60 {strides = array<i32>} : memref<8x1xf32, #tpu.memory_space<vmem>>, vector<8x1xf32>,
      %cst_68 = arith.constant 0.000000e+00 : f32
      %62 = vector.broadcast %cst_68 : f32 to vector<8x1xf32>
      %c0_69 = arith.constant 0 : index
      %c0_70 = arith.constant 0 : index
      %63 = vector.load %arg10[%c0_69, %c0_70] : memref<8x1xf32, #tpu.memory_space<vmem>>, vector<8x1xf32>
      tpu.vector_store %arg10[%c0_69, %c0_70], %62 {strides = array<i32>} : memref<8x1xf32, #tpu.memory_space<vmem>>, vector<8x1xf32>,
    } else {
    }
    %c0 = arith.constant 0 : index
    %c0_1 = arith.constant 0 : index
    %c0_2 = arith.constant 0 : index
    %c0_3 = arith.constant 0 : index
    %3 = vector.load %arg1[%c0, %c0_1, %c0_2, %c0_3] : memref<1x16x16x4xf32, #tpu.memory_space<vmem>>, vector<1x16x16x4xf32>
    %4 = vector.shape_cast %3 : vector<1x16x16x4xf32> to vector<16x16x4xf32>
    %c1 = arith.constant 1 : index
    %c1_4 = arith.constant 1 : index
    %c0_5 = arith.constant 0 : index
    %5 = vector.load %arg7[%c1, %c1_4, %c0_5] : memref<18x18x4xf32, #tpu.memory_space<vmem>>, vector<16x16x4xf32>
    tpu.vector_store %arg7[%c1, %c1_4, %c0_5], %4 {strides = array<i32>} : memref<18x18x4xf32, #tpu.memory_space<vmem>>, vector<16x16x4xf32>,
    %c0_6 = arith.constant 0 : index
    %c0_7 = arith.constant 0 : index
    %c0_8 = arith.constant 0 : index
    %6 = vector.load %arg7[%c0_6, %c0_7, %c0_8] : memref<18x18x4xf32, #tpu.memory_space<vmem>>, vector<16x16x4xf32>
    %7 = vector.shape_cast %6 : vector<16x16x4xf32> to vector<256x4xf32>
    %c0_9 = arith.constant 0 : index
    %c0_10 = arith.constant 0 : index
    %8 = vector.load %arg8[%c0_9, %c0_10] : memref<256x36xf32, #tpu.memory_space<vmem>>, vector<256x4xf32>
    tpu.vector_store %arg8[%c0_9, %c0_10], %7 {strides = array<i32>} : memref<256x36xf32, #tpu.memory_space<vmem>>, vector<256x4xf32>,
    %c0_11 = arith.constant 0 : index
    %c1_12 = arith.constant 1 : index
    %c0_13 = arith.constant 0 : index
    %9 = vector.load %arg7[%c0_11, %c1_12, %c0_13] : memref<18x18x4xf32, #tpu.memory_space<vmem>>, vector<16x16x4xf32>
    %10 = vector.shape_cast %9 : vector<16x16x4xf32> to vector<256x4xf32>
    %c0_14 = arith.constant 0 : index
    %c4 = arith.constant 4 : index
    %11 = vector.load %arg8[%c0_14, %c4] : memref<256x36xf32, #tpu.memory_space<vmem>>, vector<256x4xf32>
    tpu.vector_store %arg8[%c0_14, %c4], %10 {strides = array<i32>} : memref<256x36xf32, #tpu.memory_space<vmem>>, vector<256x4xf32>,
    %c0_15 = arith.constant 0 : index
    %c2 = arith.constant 2 : index
    %c0_16 = arith.constant 0 : index
    %12 = vector.load %arg7[%c0_15, %c2, %c0_16] : memref<18x18x4xf32, #tpu.memory_space<vmem>>, vector<16x16x4xf32>
    %13 = vector.shape_cast %12 : vector<16x16x4xf32> to vector<256x4xf32>
    %c0_17 = arith.constant 0 : index
    %c8 = arith.constant 8 : index
    %14 = vector.load %arg8[%c0_17, %c8] : memref<256x36xf32, #tpu.memory_space<vmem>>, vector<256x4xf32>
    tpu.vector_store %arg8[%c0_17, %c8], %13 {strides = array<i32>} : memref<256x36xf32, #tpu.memory_space<vmem>>, vector<256x4xf32>,
    %c1_18 = arith.constant 1 : index
    %c0_19 = arith.constant 0 : index
    %c0_20 = arith.constant 0 : index
    %15 = vector.load %arg7[%c1_18, %c0_19, %c0_20] : memref<18x18x4xf32, #tpu.memory_space<vmem>>, vector<16x16x4xf32>
    %16 = vector.shape_cast %15 : vector<16x16x4xf32> to vector<256x4xf32>
    %c0_21 = arith.constant 0 : index
    %c12 = arith.constant 12 : index
    %17 = vector.load %arg8[%c0_21, %c12] : memref<256x36xf32, #tpu.memory_space<vmem>>, vector<256x4xf32>
    tpu.vector_store %arg8[%c0_21, %c12], %16 {strides = array<i32>} : memref<256x36xf32, #tpu.memory_space<vmem>>, vector<256x4xf32>,
    %c1_22 = arith.constant 1 : index
    %c1_23 = arith.constant 1 : index
    %c0_24 = arith.constant 0 : index
    %18 = vector.load %arg7[%c1_22, %c1_23, %c0_24] : memref<18x18x4xf32, #tpu.memory_space<vmem>>, vector<16x16x4xf32>
    %19 = vector.shape_cast %18 : vector<16x16x4xf32> to vector<256x4xf32>
    %c0_25 = arith.constant 0 : index
    %c16 = arith.constant 16 : index
    %20 = vector.load %arg8[%c0_25, %c16] : memref<256x36xf32, #tpu.memory_space<vmem>>, vector<256x4xf32>
    tpu.vector_store %arg8[%c0_25, %c16], %19 {strides = array<i32>} : memref<256x36xf32, #tpu.memory_space<vmem>>, vector<256x4xf32>,
    %c1_26 = arith.constant 1 : index
    %c2_27 = arith.constant 2 : index
    %c0_28 = arith.constant 0 : index
    %21 = vector.load %arg7[%c1_26, %c2_27, %c0_28] : memref<18x18x4xf32, #tpu.memory_space<vmem>>, vector<16x16x4xf32>
    %22 = vector.shape_cast %21 : vector<16x16x4xf32> to vector<256x4xf32>
    %c0_29 = arith.constant 0 : index
    %c20 = arith.constant 20 : index
    %23 = vector.load %arg8[%c0_29, %c20] : memref<256x36xf32, #tpu.memory_space<vmem>>, vector<256x4xf32>
    tpu.vector_store %arg8[%c0_29, %c20], %22 {strides = array<i32>} : memref<256x36xf32, #tpu.memory_space<vmem>>, vector<256x4xf32>,
    %c2_30 = arith.constant 2 : index
    %c0_31 = arith.constant 0 : index
    %c0_32 = arith.constant 0 : index
    %24 = vector.load %arg7[%c2_30, %c0_31, %c0_32] : memref<18x18x4xf32, #tpu.memory_space<vmem>>, vector<16x16x4xf32>
    %25 = vector.shape_cast %24 : vector<16x16x4xf32> to vector<256x4xf32>
    %c0_33 = arith.constant 0 : index
    %c24 = arith.constant 24 : index
    %26 = vector.load %arg8[%c0_33, %c24] : memref<256x36xf32, #tpu.memory_space<vmem>>, vector<256x4xf32>
    tpu.vector_store %arg8[%c0_33, %c24], %25 {strides = array<i32>} : memref<256x36xf32, #tpu.memory_space<vmem>>, vector<256x4xf32>,
    %c2_34 = arith.constant 2 : index
    %c1_35 = arith.constant 1 : index
    %c0_36 = arith.constant 0 : index
    %27 = vector.load %arg7[%c2_34, %c1_35, %c0_36] : memref<18x18x4xf32, #tpu.memory_space<vmem>>, vector<16x16x4xf32>
    %28 = vector.shape_cast %27 : vector<16x16x4xf32> to vector<256x4xf32>
    %c0_37 = arith.constant 0 : index
    %c28 = arith.constant 28 : index
    %29 = vector.load %arg8[%c0_37, %c28] : memref<256x36xf32, #tpu.memory_space<vmem>>, vector<256x4xf32>
    tpu.vector_store %arg8[%c0_37, %c28], %28 {strides = array<i32>} : memref<256x36xf32, #tpu.memory_space<vmem>>, vector<256x4xf32>,
    %c2_38 = arith.constant 2 : index
    %c2_39 = arith.constant 2 : index
    %c0_40 = arith.constant 0 : index
    %30 = vector.load %arg7[%c2_38, %c2_39, %c0_40] : memref<18x18x4xf32, #tpu.memory_space<vmem>>, vector<16x16x4xf32>
    %31 = vector.shape_cast %30 : vector<16x16x4xf32> to vector<256x4xf32>
    %c0_41 = arith.constant 0 : index
    %c32 = arith.constant 32 : index
    %32 = vector.load %arg8[%c0_41, %c32] : memref<256x36xf32, #tpu.memory_space<vmem>>, vector<256x4xf32>
    tpu.vector_store %arg8[%c0_41, %c32], %31 {strides = array<i32>} : memref<256x36xf32, #tpu.memory_space<vmem>>, vector<256x4xf32>,
    %c0_42 = arith.constant 0 : index
    %c0_43 = arith.constant 0 : index
    %33 = vector.load %arg8[%c0_42, %c0_43] : memref<256x36xf32, #tpu.memory_space<vmem>>, vector<256x36xf32>
    %34 = arith.truncf %33 : vector<256x36xf32> to vector<256x36xbf16>
    %c0_44 = arith.constant 0 : index
    %c0_45 = arith.constant 0 : index
    %35 = vector.load %arg2[%c0_44, %c0_45] : memref<8x36xbf16, #tpu.memory_space<vmem>>, vector<8x36xbf16>
    %cst = arith.constant dense<0.000000e+00> : vector<8x256xf32>
    %36 = tpu.matmul %35, %34, %cst {dimension_numbers = #tpu.dot_dimension_numbers<[1], [1], [0], [0], [0, 0, 1, 0], [], []>} : vector<8x36xbf16>, vector<256x36xbf16>, vector<8x256xf32> -> vector<8x256xf32>
    %c0_46 = arith.constant 0 : index
    %c0_47 = arith.constant 0 : index
    %37 = vector.load %arg3[%c0_46, %c0_47] : memref<8x1xf32, #tpu.memory_space<vmem>>, vector<8x1xf32>
    %38 = vector.broadcast %37 : vector<8x1xf32> to vector<8x256xf32>
    %39 = arith.addf %36, %38 : vector<8x256xf32>
    %40 = arith.index_cast %arg0 : i32 to index
    %c0_48 = arith.constant 0 : index
    %c0_49 = arith.constant 0 : index
    %41 = vector.load %arg6[%40, %c0_48, %c0_49] : memref<2x8x256xf32, #tpu.memory_space<vmem>>, vector<1x8x256xf32>
    %42 = vector.shape_cast %41 : vector<1x8x256xf32> to vector<8x256xf32>
    %43 = vector.shape_cast %39 : vector<8x256xf32> to vector<1x8x256xf32>
    tpu.vector_store %arg6[%40, %c0_48, %c0_49], %43 {strides = array<i32>} : memref<2x8x256xf32, #tpu.memory_space<vmem>>, vector<1x8x256xf32>,
    %c0_50 = arith.constant 0 : index
    %c0_51 = arith.constant 0 : index
    %44 = vector.load %arg9[%c0_50, %c0_51] : memref<8x1xf32, #tpu.memory_space<vmem>>, vector<8x1xf32>
    %cst_52 = arith.constant dense<0.000000e+00> : vector<8xf32>
    %45 = vector.multi_reduction <add>, %39, %cst_52 [1] : vector<8x256xf32> to vector<8xf32>
    %46 = vector.shape_cast %45 : vector<8xf32> to vector<8x1xf32>
    %47 = arith.addf %44, %46 : vector<8x1xf32>
    %c0_53 = arith.constant 0 : index
    %c0_54 = arith.constant 0 : index
    %48 = vector.load %arg9[%c0_53, %c0_54] : memref<8x1xf32, #tpu.memory_space<vmem>>, vector<8x1xf32>
    tpu.vector_store %arg9[%c0_53, %c0_54], %47 {strides = array<i32>} : memref<8x1xf32, #tpu.memory_space<vmem>>, vector<8x1xf32>,
    %c0_55 = arith.constant 0 : index
    %c0_56 = arith.constant 0 : index
    %49 = vector.load %arg10[%c0_55, %c0_56] : memref<8x1xf32, #tpu.memory_space<vmem>>, vector<8x1xf32>
    %50 = arith.mulf %39, %39 : vector<8x256xf32>
    %cst_57 = arith.constant dense<0.000000e+00> : vector<8xf32>
    %51 = vector.multi_reduction <add>, %50, %cst_57 [1] : vector<8x256xf32> to vector<8xf32>
    %52 = vector.shape_cast %51 : vector<8xf32> to vector<8x1xf32>
    %53 = arith.addf %49, %52 : vector<8x1xf32>
    %c0_58 = arith.constant 0 : index
    %c0_59 = arith.constant 0 : index
    %54 = vector.load %arg10[%c0_58, %c0_59] : memref<8x1xf32, #tpu.memory_space<vmem>>, vector<8x1xf32>
    tpu.vector_store %arg10[%c0_58, %c0_59], %53 {strides = array<i32>} : memref<8x1xf32, #tpu.memory_space<vmem>>, vector<8x1xf32>,
    %c1_i32 = arith.constant 1 : i32
    %55 = arith.cmpi eq, %arg0, %c1_i32 : i32
    %56 = arith.extui %55 : i1 to i32
    %c0_i32_60 = arith.constant 0 : i32
    %57 = arith.cmpi ne, %56, %c0_i32_60 : i32
    scf.if %57 {
      %c0_61 = arith.constant 0 : index
      %c0_62 = arith.constant 0 : index
      %58 = vector.load %arg9[%c0_61, %c0_62] : memref<8x1xf32, #tpu.memory_space<vmem>>, vector<8x1xf32>
      %cst_63 = arith.constant 0.001953125 : f32
      %59 = vector.broadcast %cst_63 : f32 to vector<8x1xf32>
      %60 = arith.mulf %58, %59 : vector<8x1xf32>
      %c0_64 = arith.constant 0 : index
      %c0_65 = arith.constant 0 : index
      %61 = vector.load %arg10[%c0_64, %c0_65] : memref<8x1xf32, #tpu.memory_space<vmem>>, vector<8x1xf32>
      %cst_66 = arith.constant 0.001953125 : f32
      %62 = vector.broadcast %cst_66 : f32 to vector<8x1xf32>
      %63 = arith.mulf %61, %62 : vector<8x1xf32>
      %64 = arith.mulf %60, %60 : vector<8x1xf32>
      %65 = arith.subf %63, %64 : vector<8x1xf32>
      %cst_67 = arith.constant 0.000000e+00 : f32
      %66 = vector.broadcast %cst_67 : f32 to vector<8x1xf32>
      %67 = arith.maximumf %65, %66 : vector<8x1xf32>
      %c0_68 = arith.constant 0 : index
      %c0_69 = arith.constant 0 : index
      %68 = vector.load %arg4[%c0_68, %c0_69] : memref<8x1xf32, #tpu.memory_space<vmem>>, vector<8x1xf32>
      %cst_70 = arith.constant 9.99999974E-6 : f32
      %69 = vector.broadcast %cst_70 : f32 to vector<8x1xf32>
      %70 = arith.addf %67, %69 : vector<8x1xf32>
      %71 = math.rsqrt %70 : vector<8x1xf32>
      %72 = arith.mulf %68, %71 : vector<8x1xf32>
      %c0_71 = arith.constant 0 : index
      %c0_72 = arith.constant 0 : index
      %73 = vector.load %arg5[%c0_71, %c0_72] : memref<8x1xf32, #tpu.memory_space<vmem>>, vector<8x1xf32>
      %74 = arith.mulf %60, %72 : vector<8x1xf32>
      %75 = arith.subf %73, %74 : vector<8x1xf32>
      %c0_73 = arith.constant 0 : index
      %c0_74 = arith.constant 0 : index
      %c0_75 = arith.constant 0 : index
      %76 = vector.load %arg6[%c0_73, %c0_74, %c0_75] : memref<2x8x256xf32, #tpu.memory_space<vmem>>, vector<2x8x256xf32>
      %77 = vector.shape_cast %72 : vector<8x1xf32> to vector<1x8x1xf32>
      %78 = vector.broadcast %77 : vector<1x8x1xf32> to vector<2x8x256xf32>
      %79 = arith.mulf %76, %78 : vector<2x8x256xf32>
      %80 = vector.shape_cast %75 : vector<8x1xf32> to vector<1x8x1xf32>
      %81 = vector.broadcast %80 : vector<1x8x1xf32> to vector<2x8x256xf32>
      %82 = arith.addf %79, %81 : vector<2x8x256xf32>
      %cst_76 = arith.constant 0.000000e+00 : f32
      %83 = vector.broadcast %cst_76 : f32 to vector<2x8x256xf32>
      %84 = arith.maximumf %82, %83 : vector<2x8x256xf32>
      %c0_77 = arith.constant 0 : index
      %c0_78 = arith.constant 0 : index
      %c0_79 = arith.constant 0 : index
      %85 = vector.load %arg6[%c0_77, %c0_78, %c0_79] : memref<2x8x256xf32, #tpu.memory_space<vmem>>, vector<2x8x256xf32>
      tpu.vector_store %arg6[%c0_77, %c0_78, %c0_79], %84 {strides = array<i32>} : memref<2x8x256xf32, #tpu.memory_space<vmem>>, vector<2x8x256xf32>,
    } else {
    }
    return
  }
  func.func @transform_0(%arg0: i32) -> (i32, i32, i32, i32) {
    %c0_i32 = arith.constant 0 : i32
    %c0_i32_0 = arith.constant 0 : i32
    %c0_i32_1 = arith.constant 0 : i32
    %c0_i32_2 = arith.constant 0 : i32
    return %arg0, %c0_i32, %c0_i32_0, %c0_i32_1 : i32, i32, i32, i32
  }
  func.func @transform_1(%arg0: i32) -> (i32, i32) {
    %c0_i32 = arith.constant 0 : i32
    %c0_i32_0 = arith.constant 0 : i32
    %c0_i32_1 = arith.constant 0 : i32
    return %c0_i32, %c0_i32_0 : i32, i32
  }
  func.func @transform_2(%arg0: i32) -> (i32, i32) {
    %c0_i32 = arith.constant 0 : i32
    %c0_i32_0 = arith.constant 0 : i32
    %c0_i32_1 = arith.constant 0 : i32
    return %c0_i32, %c0_i32_0 : i32, i32
  }
  func.func @transform_3(%arg0: i32) -> (i32, i32) {
    %c0_i32 = arith.constant 0 : i32
    %c0_i32_0 = arith.constant 0 : i32
    %c0_i32_1 = arith.constant 0 : i32
    return %c0_i32, %c0_i32_0 : i32, i32
  }
  func.func @transform_4(%arg0: i32) -> (i32, i32) {
    %c0_i32 = arith.constant 0 : i32
    %c0_i32_0 = arith.constant 0 : i32
    %c0_i32_1 = arith.constant 0 : i32
    return %c0_i32, %c0_i32_0 : i32, i32
  }
  func.func @transform_5(%arg0: i32) -> (i32, i32, i32) {
    %c0_i32 = arith.constant 0 : i32
    %c0_i32_0 = arith.constant 0 : i32
    %c0_i32_1 = arith.constant 0 : i32
    %c0_i32_2 = arith.constant 0 : i32
    return %c0_i32, %c0_i32_0, %c0_i32_1 : i32, i32, i32
  }
}

</mosaic_0001>

<llo_original>
// kernel: conv_block_forward.1
$region0: #{conv_block_forward.1}
  #allocation0 [shape = 'u32[]', space=smem, size = 0x4, offset = 0x4, fixed_abs, tag = 'smem constant byte address 0x4 - core index']
  #allocation1 [shape = 'u32[144,128]{1,0:T(1,128)}', space=vmem, size = 0x12000, scoped, tag = 'internal scratch']
  #allocation2 [shape = 'f32[18,18,4]{2,1,0:T(8,128)}', space=vmem, size = 0x36000, scoped, tag = 'scratch operand']
  #allocation3 [shape = 'f32[256,36]{1,0:T(8,128)}', space=vmem, size = 0x20000, scoped, tag = 'scratch operand']
  #allocation4 [shape = 'f32[8,1]{1,0:T(8,128)}', space=vmem, size = 0x1000, scoped, tag = 'scratch operand']
  #allocation5 [shape = 'f32[8,1]{1,0:T(8,128)}', space=vmem, size = 0x1000, scoped, tag = 'scratch operand']
  %s0 = inlined_call_operand.vmem [shape: f32[2,16,16,4], index: 0, kind: input, shape index: {}]
  %s1 = inlined_call_operand.vmem [shape: bf16[8,36], index: 1, kind: input, shape index: {}]
  %s2 = inlined_call_operand.vmem [shape: f32[8,1], index: 2, kind: input, shape index: {}]
  %s3 = inlined_call_operand.vmem [shape: f32[8,1], index: 3, kind: input, shape index: {}]
  %s4 = inlined_call_operand.vmem [shape: f32[8,1], index: 4, kind: input, shape index: {}]
  %s5 = inlined_call_operand.vmem [shape: f32[2,8,256], index: 5, kind: output, shape index: {}]
  %s6 = sld [smem:[#allocation0]]
  $region61: #{conv_block_forward.1} parent=0
    _
  %s8 = ssub.s32 1, %s6
  %s9 = scalar_select 0, %s8, %s6
  loop: start=0, step=1, limit=4
  $region2: #{conv_block_forward.1} parent=0 // loop_pre_header
    _
  $region3: #{conv_block_forward.1} parent=0 // loop_header
    %s11 = sphi 0, %s15
    %p12 = scmp.ge.s32.totalorder %s11, 4
    %s21 = sphi 0, %s23
    %s24 = sphi 0, %s21
    %s25 = sphi 0, %s24
    %s41 = sphi 0, %s25
    %s45 = sphi 0, %s45
    %s47 = sphi 0, %s45
    %s48 = sphi 0, %s47
    %s62 = sphi 0, %s48
    %s66 = sphi 0, %s66
    %s68 = sphi 0, %s66
    %s69 = sphi 0, %s68
    %s83 = sphi 0, %s69
    %s87 = sphi 0, %s87
    %s89 = sphi 0, %s87
    %s90 = sphi 0, %s89
    %s104 = sphi 0, %s90
    %s108 = sphi 0, %s108
    %s110 = sphi 0, %s108
    %s111 = sphi 0, %s110
    %s125 = sphi 0, %s111
    %s129 = sphi 0, %s129
    %s131 = sphi 0, %s129
    %s132 = sphi 0, %s131
    %s146 = sphi 0, %s132
  $region4: #{conv_block_forward.1} parent=0 // loop_header_branch
    %14 = sbr.rel (%p12) target = $region8
  $region5: #{conv_block_forward.1} parent=0 // loop_body
    %s16 = ssub.s32 %s11, 1
    %s17 = ssub.s32 %s11, 2
    %s18 = sadd.s32 %s11, 1
    %s19 = ssub.s32 %s11, %s18
    %p20 = scmp.eq.s32.totalorder %s19, 0
    %s22 = sadd.s32 %s21, 1
    %s23 = scalar_select %p20, %s21, %s22
    %p26 = pneg %p20
    %p27 = scmp.eq.s32.totalorder %s11, 1
    %p28 = por %p26, %p27
    %p29 = scmp.ne.s32.totalorder %s21, %s24
    %p30 = scmp.eq.s32.totalorder %s11, 0
    %p31 = por %p29, %p30
    %p32 = scmp.ne.s32.totalorder %s21, %s24
    %p33 = scmp.eq.s32.totalorder %s16, 1
    %p34 = por %p32, %p33
    %p35 = scmp.ne.s32.totalorder %s24, %s25
    %p36 = scmp.eq.s32.totalorder %s16, 0
    %p37 = por %p35, %p36
    %p38 = scmp.ne.s32.totalorder %s24, %s25
    %p39 = scmp.eq.s32.totalorder %s17, 1
    %p40 = por %p38, %p39
    %p42 = scmp.ne.s32.totalorder %s25, %s41
    %p43 = scmp.eq.s32.totalorder %s17, 0
    %p44 = por %p42, %p43
    %s46 = sadd.s32 %s45, 1
    %p49 = scmp.eq.s32.totalorder %s11, 1
    %p50 = scmp.ne.s32.totalorder %s45, %s47
    %p51 = scmp.eq.s32.totalorder %s11, 0
    %p52 = por %p50, %p51
    %p53 = scmp.ne.s32.totalorder %s45, %s47
    %p54 = scmp.eq.s32.totalorder %s16, 1
    %p55 = por %p53, %p54
    %p56 = scmp.ne.s32.totalorder %s47, %s48
    %p57 = scmp.eq.s32.totalorder %s16, 0
    %p58 = por %p56, %p57
    %p59 = scmp.ne.s32.totalorder %s47, %s48
    %p60 = scmp.eq.s32.totalorder %s17, 1
    %p61 = por %p59, %p60
    %p63 = scmp.ne.s32.totalorder %s48, %s62
    %p64 = scmp.eq.s32.totalorder %s17, 0
    %p65 = por %p63, %p64
    %s67 = sadd.s32 %s66, 1
    %p70 = scmp.eq.s32.totalorder %s11, 1
    %p71 = scmp.ne.s32.totalorder %s66, %s68
    %p72 = scmp.eq.s32.totalorder %s11, 0
    %p73 = por %p71, %p72
    %p74 = scmp.ne.s32.totalorder %s66, %s68
    %p75 = scmp.eq.s32.totalorder %s16, 1
    %p76 = por %p74, %p75
    %p77 = scmp.ne.s32.totalorder %s68, %s69
    %p78 = scmp.eq.s32.totalorder %s16, 0
    %p79 = por %p77, %p78
    %p80 = scmp.ne.s32.totalorder %s68, %s69
    %p81 = scmp.eq.s32.totalorder %s17, 1
    %p82 = por %p80, %p81
    %p84 = scmp.ne.s32.totalorder %s69, %s83
    %p85 = scmp.eq.s32.totalorder %s17, 0
    %p86 = por %p84, %p85
    %s88 = sadd.s32 %s87, 1
    %p91 = scmp.eq.s32.totalorder %s11, 1
    %p92 = scmp.ne.s32.totalorder %s87, %s89
    %p93 = scmp.eq.s32.totalorder %s11, 0
    %p94 = por %p92, %p93
    %p95 = scmp.ne.s32.totalorder %s87, %s89
    %p96 = scmp.eq.s32.totalorder %s16, 1
    %p97 = por %p95, %p96
    %p98 = scmp.ne.s32.totalorder %s89, %s90
    %p99 = scmp.eq.s32.totalorder %s16, 0
    %p100 = por %p98, %p99
    %p101 = scmp.ne.s32.totalorder %s89, %s90
    %p102 = scmp.eq.s32.totalorder %s17, 1
    %p103 = por %p101, %p102
    %p105 = scmp.ne.s32.totalorder %s90, %s104
    %p106 = scmp.eq.s32.totalorder %s17, 0
    %p107 = por %p105, %p106
    %s109 = sadd.s32 %s108, 1
    %p112 = scmp.eq.s32.totalorder %s11, 1
    %p113 = scmp.ne.s32.totalorder %s108, %s110
    %p114 = scmp.eq.s32.totalorder %s11, 0
    %p115 = por %p113, %p114
    %p116 = scmp.ne.s32.totalorder %s108, %s110
    %p117 = scmp.eq.s32.totalorder %s16, 1
    %p118 = por %p116, %p117
    %p119 = scmp.ne.s32.totalorder %s110, %s111
    %p120 = scmp.eq.s32.totalorder %s16, 0
    %p121 = por %p119, %p120
    %p122 = scmp.ne.s32.totalorder %s110, %s111
    %p123 = scmp.eq.s32.totalorder %s17, 1
    %p124 = por %p122, %p123
    %p126 = scmp.ne.s32.totalorder %s111, %s125
    %p127 = scmp.eq.s32.totalorder %s17, 0
    %p128 = por %p126, %p127
    %s130 = sadd.s32 %s129, 1
    %p133 = scmp.eq.s32.totalorder %s11, 1
    %p134 = scmp.ne.s32.totalorder %s129, %s131
    %p135 = scmp.eq.s32.totalorder %s11, 0
    %p136 = por %p134, %p135
    %p137 = scmp.ne.s32.totalorder %s129, %s131
    %p138 = scmp.eq.s32.totalorder %s16, 1
    %p139 = por %p137, %p138
    %p140 = scmp.ne.s32.totalorder %s131, %s132
    %p141 = scmp.eq.s32.totalorder %s16, 0
    %p142 = por %p140, %p141
    %p143 = scmp.ne.s32.totalorder %s131, %s132
    %p144 = scmp.eq.s32.totalorder %s17, 1
    %p145 = por %p143, %p144
    %p147 = scmp.ne.s32.totalorder %s132, %s146
    %p148 = scmp.eq.s32.totalorder %s17, 0
    %p149 = por %p147, %p148
    %p150 = scmp.le.s32.totalorder 1, %s11
    %p151 = scmp.lt.s32.totalorder %s11, 3
    %p152 = pnand %p150, %p151
    %p153 = pneg %p152
    // Predicated region
    $region9: #{conv_block_forward.1} parent=5 // pred_check
      _
    $region10: #{conv_block_forward.1} parent=5 // pred_check_branch
      %155 = sbr.rel (%p152) target = $region12
    $region11: #{conv_block_forward.1} parent=5 // pred_region
      %s156 = ssub.s32 %s11, 1
      // Predicated region
      $region13: #{conv_block_forward.1} parent=11 // pred_check
        %p157 = pneg %p58
      $region14: #{conv_block_forward.1} parent=11 // pred_check_branch
        %159 = sbr.rel (%p157) target = $region16
      $region15: #{conv_block_forward.1} parent=11 // pred_region
        _
      $region16: #{conv_block_forward.1} parent=11 // pred_fallthru
        _
      // Predicated region
      $region17: #{conv_block_forward.1} parent=11 // pred_check
        %p160 = pneg %p79
      $region18: #{conv_block_forward.1} parent=11 // pred_check_branch
        %162 = sbr.rel (%p160) target = $region20
      $region19: #{conv_block_forward.1} parent=11 // pred_region
        _
      $region20: #{conv_block_forward.1} parent=11 // pred_fallthru
        _
      // Predicated region
      $region21: #{conv_block_forward.1} parent=11 // pred_check
        %p163 = pneg %p100
      $region22: #{conv_block_forward.1} parent=11 // pred_check_branch
        %165 = sbr.rel (%p163) target = $region24
      $region23: #{conv_block_forward.1} parent=11 // pred_region
        _
      $region24: #{conv_block_forward.1} parent=11 // pred_fallthru
        _
      // Predicated region
      $region25: #{conv_block_forward.1} parent=11 // pred_check
        %p166 = pneg %p121
      $region26: #{conv_block_forward.1} parent=11 // pred_check_branch
        %168 = sbr.rel (%p166) target = $region28
      $region27: #{conv_block_forward.1} parent=11 // pred_region
        _
      $region28: #{conv_block_forward.1} parent=11 // pred_fallthru
        _
    $region12: #{conv_block_forward.1} parent=5 // pred_fallthru
      _
    %p169 = scmp.lt.s32.totalorder %s11, 2
    // Predicated region
    $region29: #{conv_block_forward.1} parent=5 // pred_check
      %p170 = pneg %p169
    $region30: #{conv_block_forward.1} parent=5 // pred_check_branch
      %172 = sbr.rel (%p170) target = $region32
    $region31: #{conv_block_forward.1} parent=5 // pred_region
      // Predicated region
      $region33: #{conv_block_forward.1} parent=31 // pred_check
        %p173 = pneg %p31
      $region34: #{conv_block_forward.1} parent=31 // pred_check_branch
        %175 = sbr.rel (%p173) target = $region36
      $region35: #{conv_block_forward.1} parent=31 // pred_region
        %p176 = scmp.lt.s32.totalorder %s11, 1
        %s177 = scalar_select %p176, %s11, 1
        %s178 = smul.addr %s177, 32
        %s179 = smul.addr %s178, 8
        %s180 = scalar_lea.vmem %s0, %s179
      $region36: #{conv_block_forward.1} parent=31 // pred_fallthru
        _
    $region32: #{conv_block_forward.1} parent=5 // pred_fallthru
      _
    %p181 = scmp.le.s32.totalorder 1, %s11
    %p182 = scmp.lt.s32.totalorder %s11, 3
    %p183 = pnand %p181, %p182
    %p184 = pneg %p183
    // Predicated region
    $region37: #{conv_block_forward.1} parent=5 // pred_check
      _
    $region38: #{conv_block_forward.1} parent=5 // pred_check_branch
      %186 = sbr.rel (%p183) target = $region40
    $region39: #{conv_block_forward.1} parent=5 // pred_region
      %s187 = ssub.s32 %s11, 1
      %p188 = scmp.lt.s32.totalorder %s16, 1
      %s189 = scalar_select %p188, %s16, 1
      %s190 = smul.addr %s189, 32
      %s191 = smul.addr %s190, 8
      %s192 = scalar_lea.vmem %s0, %s191
      %p193 = pneg %p37
      %p194 = pneg %p34
      %p195 = pneg %p58
      %p196 = pneg %p55
      %p197 = pneg %p79
      %p198 = pneg %p76
      %p199 = pneg %p100
      %p200 = pneg %p97
      %p201 = pneg %p121
      %p202 = pneg %p118
      %p203 = pneg %p142
      %p204 = pneg %p139
      %p205 = scmp.lt.s32.totalorder %s16, 1
      %s206 = scalar_select %p205, %s16, 1
      %s207 = smul.addr %s206, 32
      %s208 = smul.addr %s207, 8
      %s209 = scalar_lea.vmem %s0, %s208
      %p211 = scmp.eq.s32.totalorder %s16, 0
      // Predicated region
      $region41: #{conv_block_forward.1} parent=39 // pred_check
        %p212 = pneg %p211
      $region42: #{conv_block_forward.1} parent=39 // pred_check_branch
        %214 = sbr.rel (%p212) target = $region44
      $region43: #{conv_block_forward.1} parent=39 // pred_region
        %vm215 = vcmask 31744
        %216 = vst.msk [vmem:[#allocation2] sm:$0xff] %vm215, 0.0
        %217 = vst.msk [vmem:[#allocation2 + $0x8] sm:$0xff] %vm215, 0.0
        %vm218 = vcmask 25600
        %219 = vst.msk [vmem:[#allocation2 + $0x10] sm:$0x3] %vm218, 0.0
        %220 = vst.msk [vmem:[#allocation2 + $0x18] sm:$0xff] %vm215, 0.0
        %221 = vst.msk [vmem:[#allocation2 + $0x20] sm:$0xff] %vm215, 0.0
        %222 = vst.msk [vmem:[#allocation2 + $0x28] sm:$0x3] %vm218, 0.0
        %223 = vst.msk [vmem:[#allocation2 + $0x30] sm:$0xff] %vm215, 0.0
        %224 = vst.msk [vmem:[#allocation2 + $0x38] sm:$0xff] %vm215, 0.0
        %225 = vst.msk [vmem:[#allocation2 + $0x40] sm:$0x3] %vm218, 0.0
        %226 = vst.msk [vmem:[#allocation2 + $0x48] sm:$0xff] %vm215, 0.0
        %227 = vst.msk [vmem:[#allocation2 + $0x50] sm:$0xff] %vm215, 0.0
        %228 = vst.msk [vmem:[#allocation2 + $0x58] sm:$0x3] %vm218, 0.0
        %229 = vst.msk [vmem:[#allocation2 + $0x60] sm:$0xff] %vm215, 0.0
        %230 = vst.msk [vmem:[#allocation2 + $0x68] sm:$0xff] %vm215, 0.0
        %231 = vst.msk [vmem:[#allocation2 + $0x70] sm:$0x3] %vm218, 0.0
        %232 = vst.msk [vmem:[#allocation2 + $0x78] sm:$0xff] %vm215, 0.0
        %233 = vst.msk [vmem:[#allocation2 + $0x80] sm:$0xff] %vm215, 0.0
        %234 = vst.msk [vmem:[#allocation2 + $0x88] sm:$0x3] %vm218, 0.0
        %235 = vst.msk [vmem:[#allocation2 + $0x90] sm:$0xff] %vm215, 0.0
        %236 = vst.msk [vmem:[#allocation2 + $0x98] sm:$0xff] %vm215, 0.0
        %237 = vst.msk [vmem:[#allocation2 + $0xa0] sm:$0x3] %vm218, 0.0
        %238 = vst.msk [vmem:[#allocation2 + $0xa8] sm:$0xff] %vm215, 0.0
        %239 = vst.msk [vmem:[#allocation2 + $0xb0] sm:$0xff] %vm215, 0.0
        %240 = vst.msk [vmem:[#allocation2 + $0xb8] sm:$0x3] %vm218, 0.0
        %241 = vst.msk [vmem:[#allocation2 + $0xc0] sm:$0xff] %vm215, 0.0
        %242 = vst.msk [vmem:[#allocation2 + $0xc8] sm:$0xff] %vm215, 0.0
        %243 = vst.msk [vmem:[#allocation2 + $0xd0] sm:$0x3] %vm218, 0.0
        %244 = vst.msk [vmem:[#allocation2 + $0xd8] sm:$0xff] %vm215, 0.0
        %245 = vst.msk [vmem:[#allocation2 + $0xe0] sm:$0xff] %vm215, 0.0
        %246 = vst.msk [vmem:[#allocation2 + $0xe8] sm:$0x3] %vm218, 0.0
        %247 = vst.msk [vmem:[#allocation2 + $0xf0] sm:$0xff] %vm215, 0.0
        %248 = vst.msk [vmem:[#allocation2 + $0xf8] sm:$0xff] %vm215, 0.0
        %249 = vst.msk [vmem:[#allocation2 + $0x100] sm:$0x3] %vm218, 0.0
        %250 = vst.msk [vmem:[#allocation2 + $0x108] sm:$0xff] %vm215, 0.0
        %251 = vst.msk [vmem:[#allocation2 + $0x110] sm:$0xff] %vm215, 0.0
        %252 = vst.msk [vmem:[#allocation2 + $0x118] sm:$0x3] %vm218, 0.0
        %253 = vst.msk [vmem:[#allocation2 + $0x120] sm:$0xff] %vm215, 0.0
        %254 = vst.msk [vmem:[#allocation2 + $0x128] sm:$0xff] %vm215, 0.0
        %255 = vst.msk [vmem:[#allocation2 + $0x130] sm:$0x3] %vm218, 0.0
        %256 = vst.msk [vmem:[#allocation2 + $0x138] sm:$0xff] %vm215, 0.0
        %257 = vst.msk [vmem:[#allocation2 + $0x140] sm:$0xff] %vm215, 0.0
        %258 = vst.msk [vmem:[#allocation2 + $0x148] sm:$0x3] %vm218, 0.0
        %259 = vst.msk [vmem:[#allocation2 + $0x150] sm:$0xff] %vm215, 0.0
        %260 = vst.msk [vmem:[#allocation2 + $0x158] sm:$0xff] %vm215, 0.0
        %261 = vst.msk [vmem:[#allocation2 + $0x160] sm:$0x3] %vm218, 0.0
        %262 = vst.msk [vmem:[#allocation2 + $0x168] sm:$0xff] %vm215, 0.0
        %263 = vst.msk [vmem:[#allocation2 + $0x170] sm:$0xff] %vm215, 0.0
        %264 = vst.msk [vmem:[#allocation2 + $0x178] sm:$0x3] %vm218, 0.0
        %265 = vst.msk [vmem:[#allocation2 + $0x180] sm:$0xff] %vm215, 0.0
        %266 = vst.msk [vmem:[#allocation2 + $0x188] sm:$0xff] %vm215, 0.0
        %267 = vst.msk [vmem:[#allocation2 + $0x190] sm:$0x3] %vm218, 0.0
        %268 = vst.msk [vmem:[#allocation2 + $0x198] sm:$0xff] %vm215, 0.0
        %269 = vst.msk [vmem:[#allocation2 + $0x1a0] sm:$0xff] %vm215, 0.0
        %270 = vst.msk [vmem:[#allocation2 + $0x1a8] sm:$0x3] %vm218, 0.0
        %vm271 = vcmask 7168
        %272 = vst.msk [vmem:[#allocation4] sm:$0xff] %vm271, 0.0
        %273 = vst.msk [vmem:[#allocation5] sm:$0xff] %vm271, 0.0
      $region44: #{conv_block_forward.1} parent=39 // pred_fallthru
        _
      %v274 = vld [vmem:[%s209] sm:$0xff]
      %v275 = vld [vmem:[%s209 + $0x8] sm:$0xff]
      %v276 = vld [vmem:[%s209 + $0x10] sm:$0xff]
      %v277 = vld [vmem:[%s209 + $0x18] sm:$0xff]
      %v278 = vld [vmem:[%s209 + $0x20] sm:$0xff]
      %v279 = vld [vmem:[%s209 + $0x28] sm:$0xff]
      %v280 = vld [vmem:[%s209 + $0x30] sm:$0xff]
      %v281 = vld [vmem:[%s209 + $0x38] sm:$0xff]
      %v282 = vld [vmem:[%s209 + $0x40] sm:$0xff]
      %v283 = vld [vmem:[%s209 + $0x48] sm:$0xff]
      %v284 = vld [vmem:[%s209 + $0x50] sm:$0xff]
      %v285 = vld [vmem:[%s209 + $0x58] sm:$0xff]
      %v286 = vld [vmem:[%s209 + $0x60] sm:$0xff]
      %v287 = vld [vmem:[%s209 + $0x68] sm:$0xff]
      %v288 = vld [vmem:[%s209 + $0x70] sm:$0xff]
      %v289 = vld [vmem:[%s209 + $0x78] sm:$0xff]
      %v290 = vld [vmem:[%s209 + $0x80] sm:$0xff]
      %v291 = vld [vmem:[%s209 + $0x88] sm:$0xff]
      %v292 = vld [vmem:[%s209 + $0x90] sm:$0xff]
      %v293 = vld [vmem:[%s209 + $0x98] sm:$0xff]
      %v294 = vld [vmem:[%s209 + $0xa0] sm:$0xff]
      %v295 = vld [vmem:[%s209 + $0xa8] sm:$0xff]
      %v296 = vld [vmem:[%s209 + $0xb0] sm:$0xff]
      %v297 = vld [vmem:[%s209 + $0xb8] sm:$0xff]
      %v298 = vld [vmem:[%s209 + $0xc0] sm:$0xff]
      %v299 = vld [vmem:[%s209 + $0xc8] sm:$0xff]
      %v300 = vld [vmem:[%s209 + $0xd0] sm:$0xff]
      %v301 = vld [vmem:[%s209 + $0xd8] sm:$0xff]
      %v302 = vld [vmem:[%s209 + $0xe0] sm:$0xff]
      %v303 = vld [vmem:[%s209 + $0xe8] sm:$0xff]
      %v304 = vld [vmem:[%s209 + $0xf0] sm:$0xff]
      %v305 = vld [vmem:[%s209 + $0xf8] sm:$0xff]
      %s306 = scalar_lea.vmem [#allocation2], 24
      %vm307 = vcmask 31744
      %308 = vst.msk [vmem:[%s306 + $0x1] sm:$0xff] %vm307, %v274
      %309 = vst.msk [vmem:[%s306 + $0x9] sm:$0xff] %vm307, %v275
      %310 = vst.msk [vmem:[%s306 + $0x19] sm:$0xff] %vm307, %v276
      %311 = vst.msk [vmem:[%s306 + $0x21] sm:$0xff] %vm307, %v277
      %312 = vst.msk [vmem:[%s306 + $0x31] sm:$0xff] %vm307, %v278
      %313 = vst.msk [vmem:[%s306 + $0x39] sm:$0xff] %vm307, %v279
      %314 = vst.msk [vmem:[%s306 + $0x49] sm:$0xff] %vm307, %v280
      %315 = vst.msk [vmem:[%s306 + $0x51] sm:$0xff] %vm307, %v281
      %316 = vst.msk [vmem:[%s306 + $0x61] sm:$0xff] %vm307, %v282
      %317 = vst.msk [vmem:[%s306 + $0x69] sm:$0xff] %vm307, %v283
      %318 = vst.msk [vmem:[%s306 + $0x79] sm:$0xff] %vm307, %v284
      %319 = vst.msk [vmem:[%s306 + $0x81] sm:$0xff] %vm307, %v285
      %320 = vst.msk [vmem:[%s306 + $0x91] sm:$0xff] %vm307, %v286
      %321 = vst.msk [vmem:[%s306 + $0x99] sm:$0xff] %vm307, %v287
      %322 = vst.msk [vmem:[%s306 + $0xa9] sm:$0xff] %vm307, %v288
      %323 = vst.msk [vmem:[%s306 + $0xb1] sm:$0xff] %vm307, %v289
      %324 = vst.msk [vmem:[%s306 + $0xc1] sm:$0xff] %vm307, %v290
      %325 = vst.msk [vmem:[%s306 + $0xc9] sm:$0xff] %vm307, %v291
      %326 = vst.msk [vmem:[%s306 + $0xd9] sm:$0xff] %vm307, %v292
      %327 = vst.msk [vmem:[%s306 + $0xe1] sm:$0xff] %vm307, %v293
      %328 = vst.msk [vmem:[%s306 + $0xf1] sm:$0xff] %vm307, %v294
      %329 = vst.msk [vmem:[%s306 + $0xf9] sm:$0xff] %vm307, %v295
      %330 = vst.msk [vmem:[%s306 + $0x109] sm:$0xff] %vm307, %v296
      %331 = vst.msk [vmem:[%s306 + $0x111] sm:$0xff] %vm307, %v297
      %332 = vst.msk [vmem:[%s306 + $0x121] sm:$0xff] %vm307, %v298
      %333 = vst.msk [vmem:[%s306 + $0x129] sm:$0xff] %vm307, %v299
      %334 = vst.msk [vmem:[%s306 + $0x139] sm:$0xff] %vm307, %v300
      %335 = vst.msk [vmem:[%s306 + $0x141] sm:$0xff] %vm307, %v301
      %336 = vst.msk [vmem:[%s306 + $0x151] sm:$0xff] %vm307, %v302
      %337 = vst.msk [vmem:[%s306 + $0x159] sm:$0xff] %vm307, %v303
      %338 = vst.msk [vmem:[%s306 + $0x169] sm:$0xff] %vm307, %v304
      %339 = vst.msk [vmem:[%s306 + $0x171] sm:$0xff] %vm307, %v305
      %v340 = vld [vmem:[#allocation2] sm:$0xff]
      %v341 = vld [vmem:[#allocation2 + $0x8] sm:$0xff]
      %v342 = vld [vmem:[#allocation2 + $0x18] sm:$0xff]
      %v343 = vld [vmem:[#allocation2 + $0x20] sm:$0xff]
      %v344 = vld [vmem:[#allocation2 + $0x30] sm:$0xff]
      %v345 = vld [vmem:[#allocation2 + $0x38] sm:$0xff]
      %v346 = vld [vmem:[#allocation2 + $0x48] sm:$0xff]
      %v347 = vld [vmem:[#allocation2 + $0x50] sm:$0xff]
      %v348 = vld [vmem:[#allocation2 + $0x60] sm:$0xff]
      %v349 = vld [vmem:[#allocation2 + $0x68] sm:$0xff]
      %v350 = vld [vmem:[#allocation2 + $0x78] sm:$0xff]
      %v351 = vld [vmem:[#allocation2 + $0x80] sm:$0xff]
      %v352 = vld [vmem:[#allocation2 + $0x90] sm:$0xff]
      %v353 = vld [vmem:[#allocation2 + $0x98] sm:$0xff]
      %v354 = vld [vmem:[#allocation2 + $0xa8] sm:$0xff]
      %v355 = vld [vmem:[#allocation2 + $0xb0] sm:$0xff]
      %v356 = vld [vmem:[#allocation2 + $0xc0] sm:$0xff]
      %v357 = vld [vmem:[#allocation2 + $0xc8] sm:$0xff]
      %v358 = vld [vmem:[#allocation2 + $0xd8] sm:$0xff]
      %v359 = vld [vmem:[#allocation2 + $0xe0] sm:$0xff]
      %v360 = vld [vmem:[#allocation2 + $0xf0] sm:$0xff]
      %v361 = vld [vmem:[#allocation2 + $0xf8] sm:$0xff]
      %v362 = vld [vmem:[#allocation2 + $0x108] sm:$0xff]
      %v363 = vld [vmem:[#allocation2 + $0x110] sm:$0xff]
      %v364 = vld [vmem:[#allocation2 + $0x120] sm:$0xff]
      %v365 = vld [vmem:[#allocation2 + $0x128] sm:$0xff]
      %v366 = vld [vmem:[#allocation2 + $0x138] sm:$0xff]
      %v367 = vld [vmem:[#allocation2 + $0x140] sm:$0xff]
      %v368 = vld [vmem:[#allocation2 + $0x150] sm:$0xff]
      %v369 = vld [vmem:[#allocation2 + $0x158] sm:$0xff]
      %v370 = vld [vmem:[#allocation2 + $0x168] sm:$0xff]
      %v371 = vld [vmem:[#allocation2 + $0x170] sm:$0xff]
      %372 = vst.msk [vmem:[#allocation3] sm:$0xff] %vm307, %v340
      %373 = vst.msk [vmem:[#allocation3 + $0x8] sm:$0xff] %vm307, %v341
      %374 = vst.msk [vmem:[#allocation3 + $0x10] sm:$0xff] %vm307, %v342
      %375 = vst.msk [vmem:[#allocation3 + $0x18] sm:$0xff] %vm307, %v343
      %376 = vst.msk [vmem:[#allocation3 + $0x20] sm:$0xff] %vm307, %v344
      %377 = vst.msk [vmem:[#allocation3 + $0x28] sm:$0xff] %vm307, %v345
      %378 = vst.msk [vmem:[#allocation3 + $0x30] sm:$0xff] %vm307, %v346
      %379 = vst.msk [vmem:[#allocation3 + $0x38] sm:$0xff] %vm307, %v347
      %380 = vst.msk [vmem:[#allocation3 + $0x40] sm:$0xff] %vm307, %v348
      %381 = vst.msk [vmem:[#allocation3 + $0x48] sm:$0xff] %vm307, %v349
      %382 = vst.msk [vmem:[#allocation3 + $0x50] sm:$0xff] %vm307, %v350
      %383 = vst.msk [vmem:[#allocation3 + $0x58] sm:$0xff] %vm307, %v351
      %384 = vst.msk [vmem:[#allocation3 + $0x60] sm:$0xff] %vm307, %v352
      %385 = vst.msk [vmem:[#allocation3 + $0x68] sm:$0xff] %vm307, %v353
      %386 = vst.msk [vmem:[#allocation3 + $0x70] sm:$0xff] %vm307, %v354
      %387 = vst.msk [vmem:[#allocation3 + $0x78] sm:$0xff] %vm307, %v355
      %388 = vst.msk [vmem:[#allocation3 + $0x80] sm:$0xff] %vm307, %v356
      %389 = vst.msk [vmem:[#allocation3 + $0x88] sm:$0xff] %vm307, %v357
      %390 = vst.msk [vmem:[#allocation3 + $0x90] sm:$0xff] %vm307, %v358
      %391 = vst.msk [vmem:[#allocation3 + $0x98] sm:$0xff] %vm307, %v359
      %392 = vst.msk [vmem:[#allocation3 + $0xa0] sm:$0xff] %vm307, %v360
      %393 = vst.msk [vmem:[#allocation3 + $0xa8] sm:$0xff] %vm307, %v361
      %394 = vst.msk [vmem:[#allocation3 + $0xb0] sm:$0xff] %vm307, %v362
      %395 = vst.msk [vmem:[#allocation3 + $0xb8] sm:$0xff] %vm307, %v363
      %396 = vst.msk [vmem:[#allocation3 + $0xc0] sm:$0xff] %vm307, %v364
      %397 = vst.msk [vmem:[#allocation3 + $0xc8] sm:$0xff] %vm307, %v365
      %398 = vst.msk [vmem:[#allocation3 + $0xd0] sm:$0xff] %vm307, %v366
      %399 = vst.msk [vmem:[#allocation3 + $0xd8] sm:$0xff] %vm307, %v367
      %400 = vst.msk [vmem:[#allocation3 + $0xe0] sm:$0xff] %vm307, %v368
      %401 = vst.msk [vmem:[#allocation3 + $0xe8] sm:$0xff] %vm307, %v369
      %402 = vst.msk [vmem:[#allocation3 + $0xf0] sm:$0xff] %vm307, %v370
      %403 = vst.msk [vmem:[#allocation3 + $0xf8] sm:$0xff] %vm307, %v371
      %v404 = vld [vmem:[#allocation2 + $0x1] sm:$0xff]
      %v405 = vld [vmem:[#allocation2 + $0x9] sm:$0xff]
      %v406 = vld [vmem:[#allocation2 + $0x19] sm:$0xff]
      %v407 = vld [vmem:[#allocation2 + $0x21] sm:$0xff]
      %v408 = vld [vmem:[#allocation2 + $0x31] sm:$0xff]
      %v409 = vld [vmem:[#allocation2 + $0x39] sm:$0xff]
      %v410 = vld [vmem:[#allocation2 + $0x49] sm:$0xff]
      %v411 = vld [vmem:[#allocation2 + $0x51] sm:$0xff]
      %v412 = vld [vmem:[#allocation2 + $0x61] sm:$0xff]
      %v413 = vld [vmem:[#allocation2 + $0x69] sm:$0xff]
      %v414 = vld [vmem:[#allocation2 + $0x79] sm:$0xff]
      %v415 = vld [vmem:[#allocation2 + $0x81] sm:$0xff]
      %v416 = vld [vmem:[#allocation2 + $0x91] sm:$0xff]
      %v417 = vld [vmem:[#allocation2 + $0x99] sm:$0xff]
      %v418 = vld [vmem:[#allocation2 + $0xa9] sm:$0xff]
      %v419 = vld [vmem:[#allocation2 + $0xb1] sm:$0xff]
      %v420 = vld [vmem:[#allocation2 + $0xc1] sm:$0xff]
      %v421 = vld [vmem:[#allocation2 + $0xc9] sm:$0xff]
      %v422 = vld [vmem:[#allocation2 + $0xd9] sm:$0xff]
      %v423 = vld [vmem:[#allocation2 + $0xe1] sm:$0xff]
      %v424 = vld [vmem:[#allocation2 + $0xf1] sm:$0xff]
      %v425 = vld [vmem:[#allocation2 + $0xf9] sm:$0xff]
      %v426 = vld [vmem:[#allocation2 + $0x109] sm:$0xff]
      %v427 = vld [vmem:[#allocation2 + $0x111] sm:$0xff]
      %v428 = vld [vmem:[#allocation2 + $0x121] sm:$0xff]
      %v429 = vld [vmem:[#allocation2 + $0x129] sm:$0xff]
      %v430 = vld [vmem:[#allocation2 + $0x139] sm:$0xff]
      %v431 = vld [vmem:[#allocation2 + $0x141] sm:$0xff]
      %v432 = vld [vmem:[#allocation2 + $0x151] sm:$0xff]
      %v433 = vld [vmem:[#allocation2 + $0x159] sm:$0xff]
      %v434 = vld [vmem:[#allocation2 + $0x169] sm:$0xff]
      %v435 = vld [vmem:[#allocation2 + $0x171] sm:$0xff]
      %468 = vrot.lane.b32.xlu0 %v404, 4
      %v469 = vpop.permute.xlu0 %468
      %470 = vrot.lane.b32.xlu0 %v405, 4
      %v471 = vpop.permute.xlu0 %470
      %472 = vrot.lane.b32.xlu0 %v406, 4
      %v473 = vpop.permute.xlu0 %472
      %474 = vrot.lane.b32.xlu0 %v407, 4
      %v475 = vpop.permute.xlu0 %474
      %476 = vrot.lane.b32.xlu0 %v408, 4
      %v477 = vpop.permute.xlu0 %476
      %478 = vrot.lane.b32.xlu0 %v409, 4
      %v479 = vpop.permute.xlu0 %478
      %480 = vrot.lane.b32.xlu0 %v410, 4
      %v481 = vpop.permute.xlu0 %480
      %482 = vrot.lane.b32.xlu0 %v411, 4
      %v483 = vpop.permute.xlu0 %482
      %484 = vrot.lane.b32.xlu0 %v412, 4
      %v485 = vpop.permute.xlu0 %484
      %486 = vrot.lane.b32.xlu0 %v413, 4
      %v487 = vpop.permute.xlu0 %486
      %488 = vrot.lane.b32.xlu0 %v414, 4
      %v489 = vpop.permute.xlu0 %488
      %490 = vrot.lane.b32.xlu0 %v415, 4
      %v491 = vpop.permute.xlu0 %490
      %492 = vrot.lane.b32.xlu0 %v416, 4
      %v493 = vpop.permute.xlu0 %492
      %494 = vrot.lane.b32.xlu0 %v417, 4
      %v495 = vpop.permute.xlu0 %494
      %496 = vrot.lane.b32.xlu0 %v418, 4
      %v497 = vpop.permute.xlu0 %496
      %498 = vrot.lane.b32.xlu0 %v419, 4
      %v499 = vpop.permute.xlu0 %498
      %500 = vrot.lane.b32.xlu0 %v420, 4
      %v501 = vpop.permute.xlu0 %500
      %502 = vrot.lane.b32.xlu0 %v421, 4
      %v503 = vpop.permute.xlu0 %502
      %504 = vrot.lane.b32.xlu0 %v422, 4
      %v505 = vpop.permute.xlu0 %504
      %506 = vrot.lane.b32.xlu0 %v423, 4
      %v507 = vpop.permute.xlu0 %506
      %508 = vrot.lane.b32.xlu0 %v424, 4
      %v509 = vpop.permute.xlu0 %508
      %510 = vrot.lane.b32.xlu0 %v425, 4
      %v511 = vpop.permute.xlu0 %510
      %512 = vrot.lane.b32.xlu0 %v426, 4
      %v513 = vpop.permute.xlu0 %512
      %514 = vrot.lane.b32.xlu0 %v427, 4
      %v515 = vpop.permute.xlu0 %514
      %516 = vrot.lane.b32.xlu0 %v428, 4
      %v517 = vpop.permute.xlu0 %516
      %518 = vrot.lane.b32.xlu0 %v429, 4
      %v519 = vpop.permute.xlu0 %518
      %520 = vrot.lane.b32.xlu0 %v430, 4
      %v521 = vpop.permute.xlu0 %520
      %522 = vrot.lane.b32.xlu0 %v431, 4
      %v523 = vpop.permute.xlu0 %522
      %524 = vrot.lane.b32.xlu0 %v432, 4
      %v525 = vpop.permute.xlu0 %524
      %526 = vrot.lane.b32.xlu0 %v433, 4
      %v527 = vpop.permute.xlu0 %526
      %528 = vrot.lane.b32.xlu0 %v434, 4
      %v529 = vpop.permute.xlu0 %528
      %530 = vrot.lane.b32.xlu0 %v435, 4
      %v531 = vpop.permute.xlu0 %530
      %vm564 = vcmask 64544
      %565 = vst.msk [vmem:[#allocation3] sm:$0xff] %vm564, %v469
      %566 = vst.msk [vmem:[#allocation3 + $0x8] sm:$0xff] %vm564, %v471
      %567 = vst.msk [vmem:[#allocation3 + $0x10] sm:$0xff] %vm564, %v473
      %568 = vst.msk [vmem:[#allocation3 + $0x18] sm:$0xff] %vm564, %v475
      %569 = vst.msk [vmem:[#allocation3 + $0x20] sm:$0xff] %vm564, %v477
      %570 = vst.msk [vmem:[#allocation3 + $0x28] sm:$0xff] %vm564, %v479
      %571 = vst.msk [vmem:[#allocation3 + $0x30] sm:$0xff] %vm564, %v481
      %572 = vst.msk [vmem:[#allocation3 + $0x38] sm:$0xff] %vm564, %v483
      %573 = vst.msk [vmem:[#allocation3 + $0x40] sm:$0xff] %vm564, %v485
      %574 = vst.msk [vmem:[#allocation3 + $0x48] sm:$0xff] %vm564, %v487
      %575 = vst.msk [vmem:[#allocation3 + $0x50] sm:$0xff] %vm564, %v489
      %576 = vst.msk [vmem:[#allocation3 + $0x58] sm:$0xff] %vm564, %v491
      %577 = vst.msk [vmem:[#allocation3 + $0x60] sm:$0xff] %vm564, %v493
      %578 = vst.msk [vmem:[#allocation3 + $0x68] sm:$0xff] %vm564, %v495
      %579 = vst.msk [vmem:[#allocation3 + $0x70] sm:$0xff] %vm564, %v497
      %580 = vst.msk [vmem:[#allocation3 + $0x78] sm:$0xff] %vm564, %v499
      %581 = vst.msk [vmem:[#allocation3 + $0x80] sm:$0xff] %vm564, %v501
      %582 = vst.msk [vmem:[#allocation3 + $0x88] sm:$0xff] %vm564, %v503
      %583 = vst.msk [vmem:[#allocation3 + $0x90] sm:$0xff] %vm564, %v505
      %584 = vst.msk [vmem:[#allocation3 + $0x98] sm:$0xff] %vm564, %v507
      %585 = vst.msk [vmem:[#allocation3 + $0xa0] sm:$0xff] %vm564, %v509
      %586 = vst.msk [vmem:[#allocation3 + $0xa8] sm:$0xff] %vm564, %v511
      %587 = vst.msk [vmem:[#allocation3 + $0xb0] sm:$0xff] %vm564, %v513
      %588 = vst.msk [vmem:[#allocation3 + $0xb8] sm:$0xff] %vm564, %v515
      %589 = vst.msk [vmem:[#allocation3 + $0xc0] sm:$0xff] %vm564, %v517
      %590 = vst.msk [vmem:[#allocation3 + $0xc8] sm:$0xff] %vm564, %v519
      %591 = vst.msk [vmem:[#allocation3 + $0xd0] sm:$0xff] %vm564, %v521
      %592 = vst.msk [vmem:[#allocation3 + $0xd8] sm:$0xff] %vm564, %v523
      %593 = vst.msk [vmem:[#allocation3 + $0xe0] sm:$0xff] %vm564, %v525
      %594 = vst.msk [vmem:[#allocation3 + $0xe8] sm:$0xff] %vm564, %v527
      %595 = vst.msk [vmem:[#allocation3 + $0xf0] sm:$0xff] %vm564, %v529
      %596 = vst.msk [vmem:[#allocation3 + $0xf8] sm:$0xff] %vm564, %v531
      %v597 = vld [vmem:[#allocation2 + $0x2] sm:$0xff]
      %v598 = vld [vmem:[#allocation2 + $0xa] sm:$0xff]
      %v599 = vld [vmem:[#allocation2 + $0x1a] sm:$0xff]
      %v600 = vld [vmem:[#allocation2 + $0x22] sm:$0xff]
      %v601 = vld [vmem:[#allocation2 + $0x32] sm:$0xff]
      %v602 = vld [vmem:[#allocation2 + $0x3a] sm:$0xff]
      %v603 = vld [vmem:[#allocation2 + $0x4a] sm:$0xff]
      %v604 = vld [vmem:[#allocation2 + $0x52] sm:$0xff]
      %v605 = vld [vmem:[#allocation2 + $0x62] sm:$0xff]
      %v606 = vld [vmem:[#allocation2 + $0x6a] sm:$0xff]
      %v607 = vld [vmem:[#allocation2 + $0x7a] sm:$0xff]
      %v608 = vld [vmem:[#allocation2 + $0x82] sm:$0xff]
      %v609 = vld [vmem:[#allocation2 + $0x92] sm:$0xff]
      %v610 = vld [vmem:[#allocation2 + $0x9a] sm:$0xff]
      %v611 = vld [vmem:[#allocation2 + $0xaa] sm:$0xff]
      %v612 = vld [vmem:[#allocation2 + $0xb2] sm:$0xff]
      %v613 = vld [vmem:[#allocation2 + $0xc2] sm:$0xff]
      %v614 = vld [vmem:[#allocation2 + $0xca] sm:$0xff]
      %v615 = vld [vmem:[#allocation2 + $0xda] sm:$0xff]
      %v616 = vld [vmem:[#allocation2 + $0xe2] sm:$0xff]
      %v617 = vld [vmem:[#allocation2 + $0xf2] sm:$0xff]
      %v618 = vld [vmem:[#allocation2 + $0xfa] sm:$0xff]
      %v619 = vld [vmem:[#allocation2 + $0x10a] sm:$0xff]
      %v620 = vld [vmem:[#allocation2 + $0x112] sm:$0xff]
      %v621 = vld [vmem:[#allocation2 + $0x122] sm:$0xff]
      %v622 = vld [vmem:[#allocation2 + $0x12a] sm:$0xff]
      %v623 = vld [vmem:[#allocation2 + $0x13a] sm:$0xff]
      %v624 = vld [vmem:[#allocation2 + $0x142] sm:$0xff]
      %v625 = vld [vmem:[#allocation2 + $0x152] sm:$0xff]
      %v626 = vld [vmem:[#allocation2 + $0x15a] sm:$0xff]
      %v627 = vld [vmem:[#allocation2 + $0x16a] sm:$0xff]
      %v628 = vld [vmem:[#allocation2 + $0x172] sm:$0xff]
      %661 = vrot.lane.b32.xlu0 %v597, 8
      %v662 = vpop.permute.xlu0 %661
      %663 = vrot.lane.b32.xlu0 %v598, 8
      %v664 = vpop.permute.xlu0 %663
      %665 = vrot.lane.b32.xlu0 %v599, 8
      %v666 = vpop.permute.xlu0 %665
      %667 = vrot.lane.b32.xlu0 %v600, 8
      %v668 = vpop.permute.xlu0 %667
      %669 = vrot.lane.b32.xlu0 %v601, 8
      %v670 = vpop.permute.xlu0 %669
      %671 = vrot.lane.b32.xlu0 %v602, 8
      %v672 = vpop.permute.xlu0 %671
      %673 = vrot.lane.b32.xlu0 %v603, 8
      %v674 = vpop.permute.xlu0 %673
      %675 = vrot.lane.b32.xlu0 %v604, 8
      %v676 = vpop.permute.xlu0 %675
      %677 = vrot.lane.b32.xlu0 %v605, 8
      %v678 = vpop.permute.xlu0 %677
      %679 = vrot.lane.b32.xlu0 %v606, 8
      %v680 = vpop.permute.xlu0 %679
      %681 = vrot.lane.b32.xlu0 %v607, 8
      %v682 = vpop.permute.xlu0 %681
      %683 = vrot.lane.b32.xlu0 %v608, 8
      %v684 = vpop.permute.xlu0 %683
      %685 = vrot.lane.b32.xlu0 %v609, 8
      %v686 = vpop.permute.xlu0 %685
      %687 = vrot.lane.b32.xlu0 %v610, 8
      %v688 = vpop.permute.xlu0 %687
      %689 = vrot.lane.b32.xlu0 %v611, 8
      %v690 = vpop.permute.xlu0 %689
      %691 = vrot.lane.b32.xlu0 %v612, 8
      %v692 = vpop.permute.xlu0 %691
      %693 = vrot.lane.b32.xlu0 %v613, 8
      %v694 = vpop.permute.xlu0 %693
      %695 = vrot.lane.b32.xlu0 %v614, 8
      %v696 = vpop.permute.xlu0 %695
      %697 = vrot.lane.b32.xlu0 %v615, 8
      %v698 = vpop.permute.xlu0 %697
      %699 = vrot.lane.b32.xlu0 %v616, 8
      %v700 = vpop.permute.xlu0 %699
      %701 = vrot.lane.b32.xlu0 %v617, 8
      %v702 = vpop.permute.xlu0 %701
      %703 = vrot.lane.b32.xlu0 %v618, 8
      %v704 = vpop.permute.xlu0 %703
      %705 = vrot.lane.b32.xlu0 %v619, 8
      %v706 = vpop.permute.xlu0 %705
      %707 = vrot.lane.b32.xlu0 %v620, 8
      %v708 = vpop.permute.xlu0 %707
      %709 = vrot.lane.b32.xlu0 %v621, 8
      %v710 = vpop.permute.xlu0 %709
      %711 = vrot.lane.b32.xlu0 %v622, 8
      %v712 = vpop.permute.xlu0 %711
      %713 = vrot.lane.b32.xlu0 %v623, 8
      %v714 = vpop.permute.xlu0 %713
      %715 = vrot.lane.b32.xlu0 %v624, 8
      %v716 = vpop.permute.xlu0 %715
      %717 = vrot.lane.b32.xlu0 %v625, 8
      %v718 = vpop.permute.xlu0 %717
      %719 = vrot.lane.b32.xlu0 %v626, 8
      %v720 = vpop.permute.xlu0 %719
      %721 = vrot.lane.b32.xlu0 %v627, 8
      %v722 = vpop.permute.xlu0 %721
      %723 = vrot.lane.b32.xlu0 %v628, 8
      %v724 = vpop.permute.xlu0 %723
      %vm757 = vcmask 97344
      %758 = vst.msk [vmem:[#allocation3] sm:$0xff] %vm757, %v662
      %759 = vst.msk [vmem:[#allocation3 + $0x8] sm:$0xff] %vm757, %v664
      %760 = vst.msk [vmem:[#allocation3 + $0x10] sm:$0xff] %vm757, %v666
      %761 = vst.msk [vmem:[#allocation3 + $0x18] sm:$0xff] %vm757, %v668
      %762 = vst.msk [vmem:[#allocation3 + $0x20] sm:$0xff] %vm757, %v670
      %763 = vst.msk [vmem:[#allocation3 + $0x28] sm:$0xff] %vm757, %v672
      %764 = vst.msk [vmem:[#allocation3 + $0x30] sm:$0xff] %vm757, %v674
      %765 = vst.msk [vmem:[#allocation3 + $0x38] sm:$0xff] %vm757, %v676
      %766 = vst.msk [vmem:[#allocation3 + $0x40] sm:$0xff] %vm757, %v678
      %767 = vst.msk [vmem:[#allocation3 + $0x48] sm:$0xff] %vm757, %v680
      %768 = vst.msk [vmem:[#allocation3 + $0x50] sm:$0xff] %vm757, %v682
      %769 = vst.msk [vmem:[#allocation3 + $0x58] sm:$0xff] %vm757, %v684
      %770 = vst.msk [vmem:[#allocation3 + $0x60] sm:$0xff] %vm757, %v686
      %771 = vst.msk [vmem:[#allocation3 + $0x68] sm:$0xff] %vm757, %v688
      %772 = vst.msk [vmem:[#allocation3 + $0x70] sm:$0xff] %vm757, %v690
      %773 = vst.msk [vmem:[#allocation3 + $0x78] sm:$0xff] %vm757, %v692
      %774 = vst.msk [vmem:[#allocation3 + $0x80] sm:$0xff] %vm757, %v694
      %775 = vst.msk [vmem:[#allocation3 + $0x88] sm:$0xff] %vm757, %v696
      %776 = vst.msk [vmem:[#allocation3 + $0x90] sm:$0xff] %vm757, %v698
      %777 = vst.msk [vmem:[#allocation3 + $0x98] sm:$0xff] %vm757, %v700
      %778 = vst.msk [vmem:[#allocation3 + $0xa0] sm:$0xff] %vm757, %v702
      %779 = vst.msk [vmem:[#allocation3 + $0xa8] sm:$0xff] %vm757, %v704
      %780 = vst.msk [vmem:[#allocation3 + $0xb0] sm:$0xff] %vm757, %v706
      %781 = vst.msk [vmem:[#allocation3 + $0xb8] sm:$0xff] %vm757, %v708
      %782 = vst.msk [vmem:[#allocation3 + $0xc0] sm:$0xff] %vm757, %v710
      %783 = vst.msk [vmem:[#allocation3 + $0xc8] sm:$0xff] %vm757, %v712
      %784 = vst.msk [vmem:[#allocation3 + $0xd0] sm:$0xff] %vm757, %v714
      %785 = vst.msk [vmem:[#allocation3 + $0xd8] sm:$0xff] %vm757, %v716
      %786 = vst.msk [vmem:[#allocation3 + $0xe0] sm:$0xff] %vm757, %v718
      %787 = vst.msk [vmem:[#allocation3 + $0xe8] sm:$0xff] %vm757, %v720
      %788 = vst.msk [vmem:[#allocation3 + $0xf0] sm:$0xff] %vm757, %v722
      %789 = vst.msk [vmem:[#allocation3 + $0xf8] sm:$0xff] %vm757, %v724
      %v790 = vld [vmem:[%s306] sm:$0xff]
      %v791 = vld [vmem:[%s306 + $0x8] sm:$0xff]
      %v792 = vld [vmem:[%s306 + $0x18] sm:$0xff]
      %v793 = vld [vmem:[%s306 + $0x20] sm:$0xff]
      %v794 = vld [vmem:[%s306 + $0x30] sm:$0xff]
      %v795 = vld [vmem:[%s306 + $0x38] sm:$0xff]
      %v796 = vld [vmem:[%s306 + $0x48] sm:$0xff]
      %v797 = vld [vmem:[%s306 + $0x50] sm:$0xff]
      %v798 = vld [vmem:[%s306 + $0x60] sm:$0xff]
      %v799 = vld [vmem:[%s306 + $0x68] sm:$0xff]
      %v800 = vld [vmem:[%s306 + $0x78] sm:$0xff]
      %v801 = vld [vmem:[%s306 + $0x80] sm:$0xff]
      %v802 = vld [vmem:[%s306 + $0x90] sm:$0xff]
      %v803 = vld [vmem:[%s306 + $0x98] sm:$0xff]
      %v804 = vld [vmem:[%s306 + $0xa8] sm:$0xff]
      %v805 = vld [vmem:[%s306 + $0xb0] sm:$0xff]
      %v806 = vld [vmem:[%s306 + $0xc0] sm:$0xff]
      %v807 = vld [vmem:[%s306 + $0xc8] sm:$0xff]
      %v808 = vld [vmem:[%s306 + $0xd8] sm:$0xff]
      %v809 = vld [vmem:[%s306 + $0xe0] sm:$0xff]
      %v810 = vld [vmem:[%s306 + $0xf0] sm:$0xff]
      %v811 = vld [vmem:[%s306 + $0xf8] sm:$0xff]
      %v812 = vld [vmem:[%s306 + $0x108] sm:$0xff]
      %v813 = vld [vmem:[%s306 + $0x110] sm:$0xff]
      %v814 = vld [vmem:[%s306 + $0x120] sm:$0xff]
      %v815 = vld [vmem:[%s306 + $0x128] sm:$0xff]
      %v816 = vld [vmem:[%s306 + $0x138] sm:$0xff]
      %v817 = vld [vmem:[%s306 + $0x140] sm:$0xff]
      %v818 = vld [vmem:[%s306 + $0x150] sm:$0xff]
      %v819 = vld [vmem:[%s306 + $0x158] sm:$0xff]
      %v820 = vld [vmem:[%s306 + $0x168] sm:$0xff]
      %v821 = vld [vmem:[%s306 + $0x170] sm:$0xff]
      %854 = vrot.lane.b32.xlu0 %v790, 12
      %v855 = vpop.permute.xlu0 %854
      %856 = vrot.lane.b32.xlu0 %v791, 12
      %v857 = vpop.permute.xlu0 %856
      %858 = vrot.lane.b32.xlu0 %v792, 12
      %v859 = vpop.permute.xlu0 %858
      %860 = vrot.lane.b32.xlu0 %v793, 12
      %v861 = vpop.permute.xlu0 %860
      %862 = vrot.lane.b32.xlu0 %v794, 12
      %v863 = vpop.permute.xlu0 %862
      %864 = vrot.lane.b32.xlu0 %v795, 12
      %v865 = vpop.permute.xlu0 %864
      %866 = vrot.lane.b32.xlu0 %v796, 12
      %v867 = vpop.permute.xlu0 %866
      %868 = vrot.lane.b32.xlu0 %v797, 12
      %v869 = vpop.permute.xlu0 %868
      %870 = vrot.lane.b32.xlu0 %v798, 12
      %v871 = vpop.permute.xlu0 %870
      %872 = vrot.lane.b32.xlu0 %v799, 12
      %v873 = vpop.permute.xlu0 %872
      %874 = vrot.lane.b32.xlu0 %v800, 12
      %v875 = vpop.permute.xlu0 %874
      %876 = vrot.lane.b32.xlu0 %v801, 12
      %v877 = vpop.permute.xlu0 %876
      %878 = vrot.lane.b32.xlu0 %v802, 12
      %v879 = vpop.permute.xlu0 %878
      %880 = vrot.lane.b32.xlu0 %v803, 12
      %v881 = vpop.permute.xlu0 %880
      %882 = vrot.lane.b32.xlu0 %v804, 12
      %v883 = vpop.permute.xlu0 %882
      %884 = vrot.lane.b32.xlu0 %v805, 12
      %v885 = vpop.permute.xlu0 %884
      %886 = vrot.lane.b32.xlu0 %v806, 12
      %v887 = vpop.permute.xlu0 %886
      %888 = vrot.lane.b32.xlu0 %v807, 12
      %v889 = vpop.permute.xlu0 %888
      %890 = vrot.lane.b32.xlu0 %v808, 12
      %v891 = vpop.permute.xlu0 %890
      %892 = vrot.lane.b32.xlu0 %v809, 12
      %v893 = vpop.permute.xlu0 %892
      %894 = vrot.lane.b32.xlu0 %v810, 12
      %v895 = vpop.permute.xlu0 %894
      %896 = vrot.lane.b32.xlu0 %v811, 12
      %v897 = vpop.permute.xlu0 %896
      %898 = vrot.lane.b32.xlu0 %v812, 12
      %v899 = vpop.permute.xlu0 %898
      %900 = vrot.lane.b32.xlu0 %v813, 12
      %v901 = vpop.permute.xlu0 %900
      %902 = vrot.lane.b32.xlu0 %v814, 12
      %v903 = vpop.permute.xlu0 %902
      %904 = vrot.lane.b32.xlu0 %v815, 12
      %v905 = vpop.permute.xlu0 %904
      %906 = vrot.lane.b32.xlu0 %v816, 12
      %v907 = vpop.permute.xlu0 %906
      %908 = vrot.lane.b32.xlu0 %v817, 12
      %v909 = vpop.permute.xlu0 %908
      %910 = vrot.lane.b32.xlu0 %v818, 12
      %v911 = vpop.permute.xlu0 %910
      %912 = vrot.lane.b32.xlu0 %v819, 12
      %v913 = vpop.permute.xlu0 %912
      %914 = vrot.lane.b32.xlu0 %v820, 12
      %v915 = vpop.permute.xlu0 %914
      %916 = vrot.lane.b32.xlu0 %v821, 12
      %v917 = vpop.permute.xlu0 %916
      %vm950 = vcmask 130144
      %951 = vst.msk [vmem:[#allocation3] sm:$0xff] %vm950, %v855
      %952 = vst.msk [vmem:[#allocation3 + $0x8] sm:$0xff] %vm950, %v857
      %953 = vst.msk [vmem:[#allocation3 + $0x10] sm:$0xff] %vm950, %v859
      %954 = vst.msk [vmem:[#allocation3 + $0x18] sm:$0xff] %vm950, %v861
      %955 = vst.msk [vmem:[#allocation3 + $0x20] sm:$0xff] %vm950, %v863
      %956 = vst.msk [vmem:[#allocation3 + $0x28] sm:$0xff] %vm950, %v865
      %957 = vst.msk [vmem:[#allocation3 + $0x30] sm:$0xff] %vm950, %v867
      %958 = vst.msk [vmem:[#allocation3 + $0x38] sm:$0xff] %vm950, %v869
      %959 = vst.msk [vmem:[#allocation3 + $0x40] sm:$0xff] %vm950, %v871
      %960 = vst.msk [vmem:[#allocation3 + $0x48] sm:$0xff] %vm950, %v873
      %961 = vst.msk [vmem:[#allocation3 + $0x50] sm:$0xff] %vm950, %v875
      %962 = vst.msk [vmem:[#allocation3 + $0x58] sm:$0xff] %vm950, %v877
      %963 = vst.msk [vmem:[#allocation3 + $0x60] sm:$0xff] %vm950, %v879
      %964 = vst.msk [vmem:[#allocation3 + $0x68] sm:$0xff] %vm950, %v881
      %965 = vst.msk [vmem:[#allocation3 + $0x70] sm:$0xff] %vm950, %v883
      %966 = vst.msk [vmem:[#allocation3 + $0x78] sm:$0xff] %vm950, %v885
      %967 = vst.msk [vmem:[#allocation3 + $0x80] sm:$0xff] %vm950, %v887
      %968 = vst.msk [vmem:[#allocation3 + $0x88] sm:$0xff] %vm950, %v889
      %969 = vst.msk [vmem:[#allocation3 + $0x90] sm:$0xff] %vm950, %v891
      %970 = vst.msk [vmem:[#allocation3 + $0x98] sm:$0xff] %vm950, %v893
      %971 = vst.msk [vmem:[#allocation3 + $0xa0] sm:$0xff] %vm950, %v895
      %972 = vst.msk [vmem:[#allocation3 + $0xa8] sm:$0xff] %vm950, %v897
      %973 = vst.msk [vmem:[#allocation3 + $0xb0] sm:$0xff] %vm950, %v899
      %974 = vst.msk [vmem:[#allocation3 + $0xb8] sm:$0xff] %vm950, %v901
      %975 = vst.msk [vmem:[#allocation3 + $0xc0] sm:$0xff] %vm950, %v903
      %976 = vst.msk [vmem:[#allocation3 + $0xc8] sm:$0xff] %vm950, %v905
      %977 = vst.msk [vmem:[#allocation3 + $0xd0] sm:$0xff] %vm950, %v907
      %978 = vst.msk [vmem:[#allocation3 + $0xd8] sm:$0xff] %vm950, %v909
      %979 = vst.msk [vmem:[#allocation3 + $0xe0] sm:$0xff] %vm950, %v911
      %980 = vst.msk [vmem:[#allocation3 + $0xe8] sm:$0xff] %vm950, %v913
      %981 = vst.msk [vmem:[#allocation3 + $0xf0] sm:$0xff] %vm950, %v915
      %982 = vst.msk [vmem:[#allocation3 + $0xf8] sm:$0xff] %vm950, %v917
      %v983 = vld [vmem:[%s306 + $0x1] sm:$0xff]
      %v984 = vld [vmem:[%s306 + $0x9] sm:$0xff]
      %v985 = vld [vmem:[%s306 + $0x19] sm:$0xff]
      %v986 = vld [vmem:[%s306 + $0x21] sm:$0xff]
      %v987 = vld [vmem:[%s306 + $0x31] sm:$0xff]
      %v988 = vld [vmem:[%s306 + $0x39] sm:$0xff]
      %v989 = vld [vmem:[%s306 + $0x49] sm:$0xff]
      %v990 = vld [vmem:[%s306 + $0x51] sm:$0xff]
      %v991 = vld [vmem:[%s306 + $0x61] sm:$0xff]
      %v992 = vld [vmem:[%s306 + $0x69] sm:$0xff]
      %v993 = vld [vmem:[%s306 + $0x79] sm:$0xff]
      %v994 = vld [vmem:[%s306 + $0x81] sm:$0xff]
      %v995 = vld [vmem:[%s306 + $0x91] sm:$0xff]
      %v996 = vld [vmem:[%s306 + $0x99] sm:$0xff]
      %v997 = vld [vmem:[%s306 + $0xa9] sm:$0xff]
      %v998 = vld [vmem:[%s306 + $0xb1] sm:$0xff]
      %v999 = vld [vmem:[%s306 + $0xc1] sm:$0xff]
      %v1000 = vld [vmem:[%s306 + $0xc9] sm:$0xff]
      %v1001 = vld [vmem:[%s306 + $0xd9] sm:$0xff]
      %v1002 = vld [vmem:[%s306 + $0xe1] sm:$0xff]
      %v1003 = vld [vmem:[%s306 + $0xf1] sm:$0xff]
      %v1004 = vld [vmem:[%s306 + $0xf9] sm:$0xff]
      %v1005 = vld [vmem:[%s306 + $0x109] sm:$0xff]
      %v1006 = vld [vmem:[%s306 + $0x111] sm:$0xff]
      %v1007 = vld [vmem:[%s306 + $0x121] sm:$0xff]
      %v1008 = vld [vmem:[%s306 + $0x129] sm:$0xff]
      %v1009 = vld [vmem:[%s306 + $0x139] sm:$0xff]
      %v1010 = vld [vmem:[%s306 + $0x141] sm:$0xff]
      %v1011 = vld [vmem:[%s306 + $0x151] sm:$0xff]
      %v1012 = vld [vmem:[%s306 + $0x159] sm:$0xff]
      %v1013 = vld [vmem:[%s306 + $0x169] sm:$0xff]
      %v1014 = vld [vmem:[%s306 + $0x171] sm:$0xff]
      %1047 = vrot.lane.b32.xlu0 %v983, 16
      %v1048 = vpop.permute.xlu0 %1047
      %1049 = vrot.lane.b32.xlu0 %v984, 16
      %v1050 = vpop.permute.xlu0 %1049
      %1051 = vrot.lane.b32.xlu0 %v985, 16
      %v1052 = vpop.permute.xlu0 %1051
      %1053 = vrot.lane.b32.xlu0 %v986, 16
      %v1054 = vpop.permute.xlu0 %1053
      %1055 = vrot.lane.b32.xlu0 %v987, 16
      %v1056 = vpop.permute.xlu0 %1055
      %1057 = vrot.lane.b32.xlu0 %v988, 16
      %v1058 = vpop.permute.xlu0 %1057
      %1059 = vrot.lane.b32.xlu0 %v989, 16
      %v1060 = vpop.permute.xlu0 %1059
      %1061 = vrot.lane.b32.xlu0 %v990, 16
      %v1062 = vpop.permute.xlu0 %1061
      %1063 = vrot.lane.b32.xlu0 %v991, 16
      %v1064 = vpop.permute.xlu0 %1063
      %1065 = vrot.lane.b32.xlu0 %v992, 16
      %v1066 = vpop.permute.xlu0 %1065
      %1067 = vrot.lane.b32.xlu0 %v993, 16
      %v1068 = vpop.permute.xlu0 %1067
      %1069 = vrot.lane.b32.xlu0 %v994, 16
      %v1070 = vpop.permute.xlu0 %1069
      %1071 = vrot.lane.b32.xlu0 %v995, 16
      %v1072 = vpop.permute.xlu0 %1071
      %1073 = vrot.lane.b32.xlu0 %v996, 16
      %v1074 = vpop.permute.xlu0 %1073
      %1075 = vrot.lane.b32.xlu0 %v997, 16
      %v1076 = vpop.permute.xlu0 %1075
      %1077 = vrot.lane.b32.xlu0 %v998, 16
      %v1078 = vpop.permute.xlu0 %1077
      %1079 = vrot.lane.b32.xlu0 %v999, 16
      %v1080 = vpop.permute.xlu0 %1079
      %1081 = vrot.lane.b32.xlu0 %v1000, 16
      %v1082 = vpop.permute.xlu0 %1081
      %1083 = vrot.lane.b32.xlu0 %v1001, 16
      %v1084 = vpop.permute.xlu0 %1083
      %1085 = vrot.lane.b32.xlu0 %v1002, 16
      %v1086 = vpop.permute.xlu0 %1085
      %1087 = vrot.lane.b32.xlu0 %v1003, 16
      %v1088 = vpop.permute.xlu0 %1087
      %1089 = vrot.lane.b32.xlu0 %v1004, 16
      %v1090 = vpop.permute.xlu0 %1089
      %1091 = vrot.lane.b32.xlu0 %v1005, 16
      %v1092 = vpop.permute.xlu0 %1091
      %1093 = vrot.lane.b32.xlu0 %v1006, 16
      %v1094 = vpop.permute.xlu0 %1093
      %1095 = vrot.lane.b32.xlu0 %v1007, 16
      %v1096 = vpop.permute.xlu0 %1095
      %1097 = vrot.lane.b32.xlu0 %v1008, 16
      %v1098 = vpop.permute.xlu0 %1097
      %1099 = vrot.lane.b32.xlu0 %v1009, 16
      %v1100 = vpop.permute.xlu0 %1099
      %1101 = vrot.lane.b32.xlu0 %v1010, 16
      %v1102 = vpop.permute.xlu0 %1101
      %1103 = vrot.lane.b32.xlu0 %v1011, 16
      %v1104 = vpop.permute.xlu0 %1103
      %1105 = vrot.lane.b32.xlu0 %v1012, 16
      %v1106 = vpop.permute.xlu0 %1105
      %1107 = vrot.lane.b32.xlu0 %v1013, 16
      %v1108 = vpop.permute.xlu0 %1107
      %1109 = vrot.lane.b32.xlu0 %v1014, 16
      %v1110 = vpop.permute.xlu0 %1109
      %vm1143 = vcmask 162944
      %1144 = vst.msk [vmem:[#allocation3] sm:$0xff] %vm1143, %v1048
      %1145 = vst.msk [vmem:[#allocation3 + $0x8] sm:$0xff] %vm1143, %v1050
      %1146 = vst.msk [vmem:[#allocation3 + $0x10] sm:$0xff] %vm1143, %v1052
      %1147 = vst.msk [vmem:[#allocation3 + $0x18] sm:$0xff] %vm1143, %v1054
      %1148 = vst.msk [vmem:[#allocation3 + $0x20] sm:$0xff] %vm1143, %v1056
      %1149 = vst.msk [vmem:[#allocation3 + $0x28] sm:$0xff] %vm1143, %v1058
      %1150 = vst.msk [vmem:[#allocation3 + $0x30] sm:$0xff] %vm1143, %v1060
      %1151 = vst.msk [vmem:[#allocation3 + $0x38] sm:$0xff] %vm1143, %v1062
      %1152 = vst.msk [vmem:[#allocation3 + $0x40] sm:$0xff] %vm1143, %v1064
      %1153 = vst.msk [vmem:[#allocation3 + $0x48] sm:$0xff] %vm1143, %v1066
      %1154 = vst.msk [vmem:[#allocation3 + $0x50] sm:$0xff] %vm1143, %v1068
      %1155 = vst.msk [vmem:[#allocation3 + $0x58] sm:$0xff] %vm1143, %v1070
      %1156 = vst.msk [vmem:[#allocation3 + $0x60] sm:$0xff] %vm1143, %v1072
      %1157 = vst.msk [vmem:[#allocation3 + $0x68] sm:$0xff] %vm1143, %v1074
      %1158 = vst.msk [vmem:[#allocation3 + $0x70] sm:$0xff] %vm1143, %v1076
      %1159 = vst.msk [vmem:[#allocation3 + $0x78] sm:$0xff] %vm1143, %v1078
      %1160 = vst.msk [vmem:[#allocation3 + $0x80] sm:$0xff] %vm1143, %v1080
      %1161 = vst.msk [vmem:[#allocation3 + $0x88] sm:$0xff] %vm1143, %v1082
      %1162 = vst.msk [vmem:[#allocation3 + $0x90] sm:$0xff] %vm1143, %v1084
      %1163 = vst.msk [vmem:[#allocation3 + $0x98] sm:$0xff] %vm1143, %v1086
      %1164 = vst.msk [vmem:[#allocation3 + $0xa0] sm:$0xff] %vm1143, %v1088
      %1165 = vst.msk [vmem:[#allocation3 + $0xa8] sm:$0xff] %vm1143, %v1090
      %1166 = vst.msk [vmem:[#allocation3 + $0xb0] sm:$0xff] %vm1143, %v1092
      %1167 = vst.msk [vmem:[#allocation3 + $0xb8] sm:$0xff] %vm1143, %v1094
      %1168 = vst.msk [vmem:[#allocation3 + $0xc0] sm:$0xff] %vm1143, %v1096
      %1169 = vst.msk [vmem:[#allocation3 + $0xc8] sm:$0xff] %vm1143, %v1098
      %1170 = vst.msk [vmem:[#allocation3 + $0xd0] sm:$0xff] %vm1143, %v1100
      %1171 = vst.msk [vmem:[#allocation3 + $0xd8] sm:$0xff] %vm1143, %v1102
      %1172 = vst.msk [vmem:[#allocation3 + $0xe0] sm:$0xff] %vm1143, %v1104
      %1173 = vst.msk [vmem:[#allocation3 + $0xe8] sm:$0xff] %vm1143, %v1106
      %1174 = vst.msk [vmem:[#allocation3 + $0xf0] sm:$0xff] %vm1143, %v1108
      %1175 = vst.msk [vmem:[#allocation3 + $0xf8] sm:$0xff] %vm1143, %v1110
      %v1176 = vld [vmem:[%s306 + $0x2] sm:$0xff]
      %v1177 = vld [vmem:[%s306 + $0xa] sm:$0xff]
      %v1178 = vld [vmem:[%s306 + $0x1a] sm:$0xff]
      %v1179 = vld [vmem:[%s306 + $0x22] sm:$0xff]
      %v1180 = vld [vmem:[%s306 + $0x32] sm:$0xff]
      %v1181 = vld [vmem:[%s306 + $0x3a] sm:$0xff]
      %v1182 = vld [vmem:[%s306 + $0x4a] sm:$0xff]
      %v1183 = vld [vmem:[%s306 + $0x52] sm:$0xff]
      %v1184 = vld [vmem:[%s306 + $0x62] sm:$0xff]
      %v1185 = vld [vmem:[%s306 + $0x6a] sm:$0xff]
      %v1186 = vld [vmem:[%s306 + $0x7a] sm:$0xff]
      %v1187 = vld [vmem:[%s306 + $0x82] sm:$0xff]
      %v1188 = vld [vmem:[%s306 + $0x92] sm:$0xff]
      %v1189 = vld [vmem:[%s306 + $0x9a] sm:$0xff]
      %v1190 = vld [vmem:[%s306 + $0xaa] sm:$0xff]
      %v1191 = vld [vmem:[%s306 + $0xb2] sm:$0xff]
      %v1192 = vld [vmem:[%s306 + $0xc2] sm:$0xff]
      %v1193 = vld [vmem:[%s306 + $0xca] sm:$0xff]
      %v1194 = vld [vmem:[%s306 + $0xda] sm:$0xff]
      %v1195 = vld [vmem:[%s306 + $0xe2] sm:$0xff]
      %v1196 = vld [vmem:[%s306 + $0xf2] sm:$0xff]
      %v1197 = vld [vmem:[%s306 + $0xfa] sm:$0xff]
      %v1198 = vld [vmem:[%s306 + $0x10a] sm:$0xff]
      %v1199 = vld [vmem:[%s306 + $0x112] sm:$0xff]
      %v1200 = vld [vmem:[%s306 + $0x122] sm:$0xff]
      %v1201 = vld [vmem:[%s306 + $0x12a] sm:$0xff]
      %v1202 = vld [vmem:[%s306 + $0x13a] sm:$0xff]
      %v1203 = vld [vmem:[%s306 + $0x142] sm:$0xff]
      %v1204 = vld [vmem:[%s306 + $0x152] sm:$0xff]
      %v1205 = vld [vmem:[%s306 + $0x15a] sm:$0xff]
      %v1206 = vld [vmem:[%s306 + $0x16a] sm:$0xff]
      %v1207 = vld [vmem:[%s306 + $0x172] sm:$0xff]
      %1240 = vrot.lane.b32.xlu0 %v1176, 20
      %v1241 = vpop.permute.xlu0 %1240
      %1242 = vrot.lane.b32.xlu0 %v1177, 20
      %v1243 = vpop.permute.xlu0 %1242
      %1244 = vrot.lane.b32.xlu0 %v1178, 20
      %v1245 = vpop.permute.xlu0 %1244
      %1246 = vrot.lane.b32.xlu0 %v1179, 20
      %v1247 = vpop.permute.xlu0 %1246
      %1248 = vrot.lane.b32.xlu0 %v1180, 20
      %v1249 = vpop.permute.xlu0 %1248
      %1250 = vrot.lane.b32.xlu0 %v1181, 20
      %v1251 = vpop.permute.xlu0 %1250
      %1252 = vrot.lane.b32.xlu0 %v1182, 20
      %v1253 = vpop.permute.xlu0 %1252
      %1254 = vrot.lane.b32.xlu0 %v1183, 20
      %v1255 = vpop.permute.xlu0 %1254
      %1256 = vrot.lane.b32.xlu0 %v1184, 20
      %v1257 = vpop.permute.xlu0 %1256
      %1258 = vrot.lane.b32.xlu0 %v1185, 20
      %v1259 = vpop.permute.xlu0 %1258
      %1260 = vrot.lane.b32.xlu0 %v1186, 20
      %v1261 = vpop.permute.xlu0 %1260
      %1262 = vrot.lane.b32.xlu0 %v1187, 20
      %v1263 = vpop.permute.xlu0 %1262
      %1264 = vrot.lane.b32.xlu0 %v1188, 20
      %v1265 = vpop.permute.xlu0 %1264
      %1266 = vrot.lane.b32.xlu0 %v1189, 20
      %v1267 = vpop.permute.xlu0 %1266
      %1268 = vrot.lane.b32.xlu0 %v1190, 20
      %v1269 = vpop.permute.xlu0 %1268
      %1270 = vrot.lane.b32.xlu0 %v1191, 20
      %v1271 = vpop.permute.xlu0 %1270
      %1272 = vrot.lane.b32.xlu0 %v1192, 20
      %v1273 = vpop.permute.xlu0 %1272
      %1274 = vrot.lane.b32.xlu0 %v1193, 20
      %v1275 = vpop.permute.xlu0 %1274
      %1276 = vrot.lane.b32.xlu0 %v1194, 20
      %v1277 = vpop.permute.xlu0 %1276
      %1278 = vrot.lane.b32.xlu0 %v1195, 20
      %v1279 = vpop.permute.xlu0 %1278
      %1280 = vrot.lane.b32.xlu0 %v1196, 20
      %v1281 = vpop.permute.xlu0 %1280
      %1282 = vrot.lane.b32.xlu0 %v1197, 20
      %v1283 = vpop.permute.xlu0 %1282
      %1284 = vrot.lane.b32.xlu0 %v1198, 20
      %v1285 = vpop.permute.xlu0 %1284
      %1286 = vrot.lane.b32.xlu0 %v1199, 20
      %v1287 = vpop.permute.xlu0 %1286
      %1288 = vrot.lane.b32.xlu0 %v1200, 20
      %v1289 = vpop.permute.xlu0 %1288
      %1290 = vrot.lane.b32.xlu0 %v1201, 20
      %v1291 = vpop.permute.xlu0 %1290
      %1292 = vrot.lane.b32.xlu0 %v1202, 20
      %v1293 = vpop.permute.xlu0 %1292
      %1294 = vrot.lane.b32.xlu0 %v1203, 20
      %v1295 = vpop.permute.xlu0 %1294
      %1296 = vrot.lane.b32.xlu0 %v1204, 20
      %v1297 = vpop.permute.xlu0 %1296
      %1298 = vrot.lane.b32.xlu0 %v1205, 20
      %v1299 = vpop.permute.xlu0 %1298
      %1300 = vrot.lane.b32.xlu0 %v1206, 20
      %v1301 = vpop.permute.xlu0 %1300
      %1302 = vrot.lane.b32.xlu0 %v1207, 20
      %v1303 = vpop.permute.xlu0 %1302
      %vm1336 = vcmask 195744
      %1337 = vst.msk [vmem:[#allocation3] sm:$0xff] %vm1336, %v1241
      %1338 = vst.msk [vmem:[#allocation3 + $0x8] sm:$0xff] %vm1336, %v1243
      %1339 = vst.msk [vmem:[#allocation3 + $0x10] sm:$0xff] %vm1336, %v1245
      %1340 = vst.msk [vmem:[#allocation3 + $0x18] sm:$0xff] %vm1336, %v1247
      %1341 = vst.msk [vmem:[#allocation3 + $0x20] sm:$0xff] %vm1336, %v1249
      %1342 = vst.msk [vmem:[#allocation3 + $0x28] sm:$0xff] %vm1336, %v1251
      %1343 = vst.msk [vmem:[#allocation3 + $0x30] sm:$0xff] %vm1336, %v1253
      %1344 = vst.msk [vmem:[#allocation3 + $0x38] sm:$0xff] %vm1336, %v1255
      %1345 = vst.msk [vmem:[#allocation3 + $0x40] sm:$0xff] %vm1336, %v1257
      %1346 = vst.msk [vmem:[#allocation3 + $0x48] sm:$0xff] %vm1336, %v1259
      %1347 = vst.msk [vmem:[#allocation3 + $0x50] sm:$0xff] %vm1336, %v1261
      %1348 = vst.msk [vmem:[#allocation3 + $0x58] sm:$0xff] %vm1336, %v1263
      %1349 = vst.msk [vmem:[#allocation3 + $0x60] sm:$0xff] %vm1336, %v1265
      %1350 = vst.msk [vmem:[#allocation3 + $0x68] sm:$0xff] %vm1336, %v1267
      %1351 = vst.msk [vmem:[#allocation3 + $0x70] sm:$0xff] %vm1336, %v1269
      %1352 = vst.msk [vmem:[#allocation3 + $0x78] sm:$0xff] %vm1336, %v1271
      %1353 = vst.msk [vmem:[#allocation3 + $0x80] sm:$0xff] %vm1336, %v1273
      %1354 = vst.msk [vmem:[#allocation3 + $0x88] sm:$0xff] %vm1336, %v1275
      %1355 = vst.msk [vmem:[#allocation3 + $0x90] sm:$0xff] %vm1336, %v1277
      %1356 = vst.msk [vmem:[#allocation3 + $0x98] sm:$0xff] %vm1336, %v1279
      %1357 = vst.msk [vmem:[#allocation3 + $0xa0] sm:$0xff] %vm1336, %v1281
      %1358 = vst.msk [vmem:[#allocation3 + $0xa8] sm:$0xff] %vm1336, %v1283
      %1359 = vst.msk [vmem:[#allocation3 + $0xb0] sm:$0xff] %vm1336, %v1285
      %1360 = vst.msk [vmem:[#allocation3 + $0xb8] sm:$0xff] %vm1336, %v1287
      %1361 = vst.msk [vmem:[#allocation3 + $0xc0] sm:$0xff] %vm1336, %v1289
      %1362 = vst.msk [vmem:[#allocation3 + $0xc8] sm:$0xff] %vm1336, %v1291
      %1363 = vst.msk [vmem:[#allocation3 + $0xd0] sm:$0xff] %vm1336, %v1293
      %1364 = vst.msk [vmem:[#allocation3 + $0xd8] sm:$0xff] %vm1336, %v1295
      %1365 = vst.msk [vmem:[#allocation3 + $0xe0] sm:$0xff] %vm1336, %v1297
      %1366 = vst.msk [vmem:[#allocation3 + $0xe8] sm:$0xff] %vm1336, %v1299
      %1367 = vst.msk [vmem:[#allocation3 + $0xf0] sm:$0xff] %vm1336, %v1301
      %1368 = vst.msk [vmem:[#allocation3 + $0xf8] sm:$0xff] %vm1336, %v1303
      %s1369 = scalar_lea.vmem [#allocation2], 48
      %v1370 = vld [vmem:[%s1369] sm:$0xff]
      %v1371 = vld [vmem:[%s1369 + $0x8] sm:$0xff]
      %v1372 = vld [vmem:[%s1369 + $0x18] sm:$0xff]
      %v1373 = vld [vmem:[%s1369 + $0x20] sm:$0xff]
      %v1374 = vld [vmem:[%s1369 + $0x30] sm:$0xff]
      %v1375 = vld [vmem:[%s1369 + $0x38] sm:$0xff]
      %v1376 = vld [vmem:[%s1369 + $0x48] sm:$0xff]
      %v1377 = vld [vmem:[%s1369 + $0x50] sm:$0xff]
      %v1378 = vld [vmem:[%s1369 + $0x60] sm:$0xff]
      %v1379 = vld [vmem:[%s1369 + $0x68] sm:$0xff]
      %v1380 = vld [vmem:[%s1369 + $0x78] sm:$0xff]
      %v1381 = vld [vmem:[%s1369 + $0x80] sm:$0xff]
      %v1382 = vld [vmem:[%s1369 + $0x90] sm:$0xff]
      %v1383 = vld [vmem:[%s1369 + $0x98] sm:$0xff]
      %v1384 = vld [vmem:[%s1369 + $0xa8] sm:$0xff]
      %v1385 = vld [vmem:[%s1369 + $0xb0] sm:$0xff]
      %v1386 = vld [vmem:[%s1369 + $0xc0] sm:$0xff]
      %v1387 = vld [vmem:[%s1369 + $0xc8] sm:$0xff]
      %v1388 = vld [vmem:[%s1369 + $0xd8] sm:$0xff]
      %v1389 = vld [vmem:[%s1369 + $0xe0] sm:$0xff]
      %v1390 = vld [vmem:[%s1369 + $0xf0] sm:$0xff]
      %v1391 = vld [vmem:[%s1369 + $0xf8] sm:$0xff]
      %v1392 = vld [vmem:[%s1369 + $0x108] sm:$0xff]
      %v1393 = vld [vmem:[%s1369 + $0x110] sm:$0xff]
      %v1394 = vld [vmem:[%s1369 + $0x120] sm:$0xff]
      %v1395 = vld [vmem:[%s1369 + $0x128] sm:$0xff]
      %v1396 = vld [vmem:[%s1369 + $0x138] sm:$0xff]
      %v1397 = vld [vmem:[%s1369 + $0x140] sm:$0xff]
      %v1398 = vld [vmem:[%s1369 + $0x150] sm:$0xff]
      %v1399 = vld [vmem:[%s1369 + $0x158] sm:$0xff]
      %v1400 = vld [vmem:[%s1369 + $0x168] sm:$0xff]
      %v1401 = vld [vmem:[%s1369 + $0x170] sm:$0xff]
      %1434 = vrot.lane.b32.xlu0 %v1370, 24
      %v1435 = vpop.permute.xlu0 %1434
      %1436 = vrot.lane.b32.xlu0 %v1371, 24
      %v1437 = vpop.permute.xlu0 %1436
      %1438 = vrot.lane.b32.xlu0 %v1372, 24
      %v1439 = vpop.permute.xlu0 %1438
      %1440 = vrot.lane.b32.xlu0 %v1373, 24
      %v1441 = vpop.permute.xlu0 %1440
      %1442 = vrot.lane.b32.xlu0 %v1374, 24
      %v1443 = vpop.permute.xlu0 %1442
      %1444 = vrot.lane.b32.xlu0 %v1375, 24
      %v1445 = vpop.permute.xlu0 %1444
      %1446 = vrot.lane.b32.xlu0 %v1376, 24
      %v1447 = vpop.permute.xlu0 %1446
      %1448 = vrot.lane.b32.xlu0 %v1377, 24
      %v1449 = vpop.permute.xlu0 %1448
      %1450 = vrot.lane.b32.xlu0 %v1378, 24
      %v1451 = vpop.permute.xlu0 %1450
      %1452 = vrot.lane.b32.xlu0 %v1379, 24
      %v1453 = vpop.permute.xlu0 %1452
      %1454 = vrot.lane.b32.xlu0 %v1380, 24
      %v1455 = vpop.permute.xlu0 %1454
      %1456 = vrot.lane.b32.xlu0 %v1381, 24
      %v1457 = vpop.permute.xlu0 %1456
      %1458 = vrot.lane.b32.xlu0 %v1382, 24
      %v1459 = vpop.permute.xlu0 %1458
      %1460 = vrot.lane.b32.xlu0 %v1383, 24
      %v1461 = vpop.permute.xlu0 %1460
      %1462 = vrot.lane.b32.xlu0 %v1384, 24
      %v1463 = vpop.permute.xlu0 %1462
      %1464 = vrot.lane.b32.xlu0 %v1385, 24
      %v1465 = vpop.permute.xlu0 %1464
      %1466 = vrot.lane.b32.xlu0 %v1386, 24
      %v1467 = vpop.permute.xlu0 %1466
      %1468 = vrot.lane.b32.xlu0 %v1387, 24
      %v1469 = vpop.permute.xlu0 %1468
      %1470 = vrot.lane.b32.xlu0 %v1388, 24
      %v1471 = vpop.permute.xlu0 %1470
      %1472 = vrot.lane.b32.xlu0 %v1389, 24
      %v1473 = vpop.permute.xlu0 %1472
      %1474 = vrot.lane.b32.xlu0 %v1390, 24
      %v1475 = vpop.permute.xlu0 %1474
      %1476 = vrot.lane.b32.xlu0 %v1391, 24
      %v1477 = vpop.permute.xlu0 %1476
      %1478 = vrot.lane.b32.xlu0 %v1392, 24
      %v1479 = vpop.permute.xlu0 %1478
      %1480 = vrot.lane.b32.xlu0 %v1393, 24
      %v1481 = vpop.permute.xlu0 %1480
      %1482 = vrot.lane.b32.xlu0 %v1394, 24
      %v1483 = vpop.permute.xlu0 %1482
      %1484 = vrot.lane.b32.xlu0 %v1395, 24
      %v1485 = vpop.permute.xlu0 %1484
      %1486 = vrot.lane.b32.xlu0 %v1396, 24
      %v1487 = vpop.permute.xlu0 %1486
      %1488 = vrot.lane.b32.xlu0 %v1397, 24
      %v1489 = vpop.permute.xlu0 %1488
      %1490 = vrot.lane.b32.xlu0 %v1398, 24
      %v1491 = vpop.permute.xlu0 %1490
      %1492 = vrot.lane.b32.xlu0 %v1399, 24
      %v1493 = vpop.permute.xlu0 %1492
      %1494 = vrot.lane.b32.xlu0 %v1400, 24
      %v1495 = vpop.permute.xlu0 %1494
      %1496 = vrot.lane.b32.xlu0 %v1401, 24
      %v1497 = vpop.permute.xlu0 %1496
      %vm1530 = vcmask 228544
      %1531 = vst.msk [vmem:[#allocation3] sm:$0xff] %vm1530, %v1435
      %1532 = vst.msk [vmem:[#allocation3 + $0x8] sm:$0xff] %vm1530, %v1437
      %1533 = vst.msk [vmem:[#allocation3 + $0x10] sm:$0xff] %vm1530, %v1439
      %1534 = vst.msk [vmem:[#allocation3 + $0x18] sm:$0xff] %vm1530, %v1441
      %1535 = vst.msk [vmem:[#allocation3 + $0x20] sm:$0xff] %vm1530, %v1443
      %1536 = vst.msk [vmem:[#allocation3 + $0x28] sm:$0xff] %vm1530, %v1445
      %1537 = vst.msk [vmem:[#allocation3 + $0x30] sm:$0xff] %vm1530, %v1447
      %1538 = vst.msk [vmem:[#allocation3 + $0x38] sm:$0xff] %vm1530, %v1449
      %1539 = vst.msk [vmem:[#allocation3 + $0x40] sm:$0xff] %vm1530, %v1451
      %1540 = vst.msk [vmem:[#allocation3 + $0x48] sm:$0xff] %vm1530, %v1453
      %1541 = vst.msk [vmem:[#allocation3 + $0x50] sm:$0xff] %vm1530, %v1455
      %1542 = vst.msk [vmem:[#allocation3 + $0x58] sm:$0xff] %vm1530, %v1457
      %1543 = vst.msk [vmem:[#allocation3 + $0x60] sm:$0xff] %vm1530, %v1459
      %1544 = vst.msk [vmem:[#allocation3 + $0x68] sm:$0xff] %vm1530, %v1461
      %1545 = vst.msk [vmem:[#allocation3 + $0x70] sm:$0xff] %vm1530, %v1463
      %1546 = vst.msk [vmem:[#allocation3 + $0x78] sm:$0xff] %vm1530, %v1465
      %1547 = vst.msk [vmem:[#allocation3 + $0x80] sm:$0xff] %vm1530, %v1467
      %1548 = vst.msk [vmem:[#allocation3 + $0x88] sm:$0xff] %vm1530, %v1469
      %1549 = vst.msk [vmem:[#allocation3 + $0x90] sm:$0xff] %vm1530, %v1471
      %1550 = vst.msk [vmem:[#allocation3 + $0x98] sm:$0xff] %vm1530, %v1473
      %1551 = vst.msk [vmem:[#allocation3 + $0xa0] sm:$0xff] %vm1530, %v1475
      %1552 = vst.msk [vmem:[#allocation3 + $0xa8] sm:$0xff] %vm1530, %v1477
      %1553 = vst.msk [vmem:[#allocation3 + $0xb0] sm:$0xff] %vm1530, %v1479
      %1554 = vst.msk [vmem:[#allocation3 + $0xb8] sm:$0xff] %vm1530, %v1481
      %1555 = vst.msk [vmem:[#allocation3 + $0xc0] sm:$0xff] %vm1530, %v1483
      %1556 = vst.msk [vmem:[#allocation3 + $0xc8] sm:$0xff] %vm1530, %v1485
      %1557 = vst.msk [vmem:[#allocation3 + $0xd0] sm:$0xff] %vm1530, %v1487
      %1558 = vst.msk [vmem:[#allocation3 + $0xd8] sm:$0xff] %vm1530, %v1489
      %1559 = vst.msk [vmem:[#allocation3 + $0xe0] sm:$0xff] %vm1530, %v1491
      %1560 = vst.msk [vmem:[#allocation3 + $0xe8] sm:$0xff] %vm1530, %v1493
      %1561 = vst.msk [vmem:[#allocation3 + $0xf0] sm:$0xff] %vm1530, %v1495
      %1562 = vst.msk [vmem:[#allocation3 + $0xf8] sm:$0xff] %vm1530, %v1497
      %v1563 = vld [vmem:[%s1369 + $0x1] sm:$0xff]
      %v1564 = vld [vmem:[%s1369 + $0x9] sm:$0xff]
      %v1565 = vld [vmem:[%s1369 + $0x19] sm:$0xff]
      %v1566 = vld [vmem:[%s1369 + $0x21] sm:$0xff]
      %v1567 = vld [vmem:[%s1369 + $0x31] sm:$0xff]
      %v1568 = vld [vmem:[%s1369 + $0x39] sm:$0xff]
      %v1569 = vld [vmem:[%s1369 + $0x49] sm:$0xff]
      %v1570 = vld [vmem:[%s1369 + $0x51] sm:$0xff]
      %v1571 = vld [vmem:[%s1369 + $0x61] sm:$0xff]
      %v1572 = vld [vmem:[%s1369 + $0x69] sm:$0xff]
      %v1573 = vld [vmem:[%s1369 + $0x79] sm:$0xff]
      %v1574 = vld [vmem:[%s1369 + $0x81] sm:$0xff]
      %v1575 = vld [vmem:[%s1369 + $0x91] sm:$0xff]
      %v1576 = vld [vmem:[%s1369 + $0x99] sm:$0xff]
      %v1577 = vld [vmem:[%s1369 + $0xa9] sm:$0xff]
      %v1578 = vld [vmem:[%s1369 + $0xb1] sm:$0xff]
      %v1579 = vld [vmem:[%s1369 + $0xc1] sm:$0xff]
      %v1580 = vld [vmem:[%s1369 + $0xc9] sm:$0xff]
      %v1581 = vld [vmem:[%s1369 + $0xd9] sm:$0xff]
      %v1582 = vld [vmem:[%s1369 + $0xe1] sm:$0xff]
      %v1583 = vld [vmem:[%s1369 + $0xf1] sm:$0xff]
      %v1584 = vld [vmem:[%s1369 + $0xf9] sm:$0xff]
      %v1585 = vld [vmem:[%s1369 + $0x109] sm:$0xff]
      %v1586 = vld [vmem:[%s1369 + $0x111] sm:$0xff]
      %v1587 = vld [vmem:[%s1369 + $0x121] sm:$0xff]
      %v1588 = vld [vmem:[%s1369 + $0x129] sm:$0xff]
      %v1589 = vld [vmem:[%s1369 + $0x139] sm:$0xff]
      %v1590 = vld [vmem:[%s1369 + $0x141] sm:$0xff]
      %v1591 = vld [vmem:[%s1369 + $0x151] sm:$0xff]
      %v1592 = vld [vmem:[%s1369 + $0x159] sm:$0xff]
      %v1593 = vld [vmem:[%s1369 + $0x169] sm:$0xff]
      %v1594 = vld [vmem:[%s1369 + $0x171] sm:$0xff]
      %1627 = vrot.lane.b32.xlu0 %v1563, 28
      %v1628 = vpop.permute.xlu0 %1627
      %1629 = vrot.lane.b32.xlu0 %v1564, 28
      %v1630 = vpop.permute.xlu0 %1629
      %1631 = vrot.lane.b32.xlu0 %v1565, 28
      %v1632 = vpop.permute.xlu0 %1631
      %1633 = vrot.lane.b32.xlu0 %v1566, 28
      %v1634 = vpop.permute.xlu0 %1633
      %1635 = vrot.lane.b32.xlu0 %v1567, 28
      %v1636 = vpop.permute.xlu0 %1635
      %1637 = vrot.lane.b32.xlu0 %v1568, 28
      %v1638 = vpop.permute.xlu0 %1637
      %1639 = vrot.lane.b32.xlu0 %v1569, 28
      %v1640 = vpop.permute.xlu0 %1639
      %1641 = vrot.lane.b32.xlu0 %v1570, 28
      %v1642 = vpop.permute.xlu0 %1641
      %1643 = vrot.lane.b32.xlu0 %v1571, 28
      %v1644 = vpop.permute.xlu0 %1643
      %1645 = vrot.lane.b32.xlu0 %v1572, 28
      %v1646 = vpop.permute.xlu0 %1645
      %1647 = vrot.lane.b32.xlu0 %v1573, 28
      %v1648 = vpop.permute.xlu0 %1647
      %1649 = vrot.lane.b32.xlu0 %v1574, 28
      %v1650 = vpop.permute.xlu0 %1649
      %1651 = vrot.lane.b32.xlu0 %v1575, 28
      %v1652 = vpop.permute.xlu0 %1651
      %1653 = vrot.lane.b32.xlu0 %v1576, 28
      %v1654 = vpop.permute.xlu0 %1653
      %1655 = vrot.lane.b32.xlu0 %v1577, 28
      %v1656 = vpop.permute.xlu0 %1655
      %1657 = vrot.lane.b32.xlu0 %v1578, 28
      %v1658 = vpop.permute.xlu0 %1657
      %1659 = vrot.lane.b32.xlu0 %v1579, 28
      %v1660 = vpop.permute.xlu0 %1659
      %1661 = vrot.lane.b32.xlu0 %v1580, 28
      %v1662 = vpop.permute.xlu0 %1661
      %1663 = vrot.lane.b32.xlu0 %v1581, 28
      %v1664 = vpop.permute.xlu0 %1663
      %1665 = vrot.lane.b32.xlu0 %v1582, 28
      %v1666 = vpop.permute.xlu0 %1665
      %1667 = vrot.lane.b32.xlu0 %v1583, 28
      %v1668 = vpop.permute.xlu0 %1667
      %1669 = vrot.lane.b32.xlu0 %v1584, 28
      %v1670 = vpop.permute.xlu0 %1669
      %1671 = vrot.lane.b32.xlu0 %v1585, 28
      %v1672 = vpop.permute.xlu0 %1671
      %1673 = vrot.lane.b32.xlu0 %v1586, 28
      %v1674 = vpop.permute.xlu0 %1673
      %1675 = vrot.lane.b32.xlu0 %v1587, 28
      %v1676 = vpop.permute.xlu0 %1675
      %1677 = vrot.lane.b32.xlu0 %v1588, 28
      %v1678 = vpop.permute.xlu0 %1677
      %1679 = vrot.lane.b32.xlu0 %v1589, 28
      %v1680 = vpop.permute.xlu0 %1679
      %1681 = vrot.lane.b32.xlu0 %v1590, 28
      %v1682 = vpop.permute.xlu0 %1681
      %1683 = vrot.lane.b32.xlu0 %v1591, 28
      %v1684 = vpop.permute.xlu0 %1683
      %1685 = vrot.lane.b32.xlu0 %v1592, 28
      %v1686 = vpop.permute.xlu0 %1685
      %1687 = vrot.lane.b32.xlu0 %v1593, 28
      %v1688 = vpop.permute.xlu0 %1687
      %1689 = vrot.lane.b32.xlu0 %v1594, 28
      %v1690 = vpop.permute.xlu0 %1689
      %vm1723 = vcmask 261344
      %1724 = vst.msk [vmem:[#allocation3] sm:$0xff] %vm1723, %v1628
      %1725 = vst.msk [vmem:[#allocation3 + $0x8] sm:$0xff] %vm1723, %v1630
      %1726 = vst.msk [vmem:[#allocation3 + $0x10] sm:$0xff] %vm1723, %v1632
      %1727 = vst.msk [vmem:[#allocation3 + $0x18] sm:$0xff] %vm1723, %v1634
      %1728 = vst.msk [vmem:[#allocation3 + $0x20] sm:$0xff] %vm1723, %v1636
      %1729 = vst.msk [vmem:[#allocation3 + $0x28] sm:$0xff] %vm1723, %v1638
      %1730 = vst.msk [vmem:[#allocation3 + $0x30] sm:$0xff] %vm1723, %v1640
      %1731 = vst.msk [vmem:[#allocation3 + $0x38] sm:$0xff] %vm1723, %v1642
      %1732 = vst.msk [vmem:[#allocation3 + $0x40] sm:$0xff] %vm1723, %v1644
      %1733 = vst.msk [vmem:[#allocation3 + $0x48] sm:$0xff] %vm1723, %v1646
      %1734 = vst.msk [vmem:[#allocation3 + $0x50] sm:$0xff] %vm1723, %v1648
      %1735 = vst.msk [vmem:[#allocation3 + $0x58] sm:$0xff] %vm1723, %v1650
      %1736 = vst.msk [vmem:[#allocation3 + $0x60] sm:$0xff] %vm1723, %v1652
      %1737 = vst.msk [vmem:[#allocation3 + $0x68] sm:$0xff] %vm1723, %v1654
      %1738 = vst.msk [vmem:[#allocation3 + $0x70] sm:$0xff] %vm1723, %v1656
      %1739 = vst.msk [vmem:[#allocation3 + $0x78] sm:$0xff] %vm1723, %v1658
      %1740 = vst.msk [vmem:[#allocation3 + $0x80] sm:$0xff] %vm1723, %v1660
      %1741 = vst.msk [vmem:[#allocation3 + $0x88] sm:$0xff] %vm1723, %v1662
      %1742 = vst.msk [vmem:[#allocation3 + $0x90] sm:$0xff] %vm1723, %v1664
      %1743 = vst.msk [vmem:[#allocation3 + $0x98] sm:$0xff] %vm1723, %v1666
      %1744 = vst.msk [vmem:[#allocation3 + $0xa0] sm:$0xff] %vm1723, %v1668
      %1745 = vst.msk [vmem:[#allocation3 + $0xa8] sm:$0xff] %vm1723, %v1670
      %1746 = vst.msk [vmem:[#allocation3 + $0xb0] sm:$0xff] %vm1723, %v1672
      %1747 = vst.msk [vmem:[#allocation3 + $0xb8] sm:$0xff] %vm1723, %v1674
      %1748 = vst.msk [vmem:[#allocation3 + $0xc0] sm:$0xff] %vm1723, %v1676
      %1749 = vst.msk [vmem:[#allocation3 + $0xc8] sm:$0xff] %vm1723, %v1678
      %1750 = vst.msk [vmem:[#allocation3 + $0xd0] sm:$0xff] %vm1723, %v1680
      %1751 = vst.msk [vmem:[#allocation3 + $0xd8] sm:$0xff] %vm1723, %v1682
      %1752 = vst.msk [vmem:[#allocation3 + $0xe0] sm:$0xff] %vm1723, %v1684
      %1753 = vst.msk [vmem:[#allocation3 + $0xe8] sm:$0xff] %vm1723, %v1686
      %1754 = vst.msk [vmem:[#allocation3 + $0xf0] sm:$0xff] %vm1723, %v1688
      %1755 = vst.msk [vmem:[#allocation3 + $0xf8] sm:$0xff] %vm1723, %v1690
      %v1756 = vld [vmem:[%s1369 + $0x2] sm:$0xff]
      %v1757 = vld [vmem:[%s1369 + $0xa] sm:$0xff]
      %v1758 = vld [vmem:[%s1369 + $0x1a] sm:$0xff]
      %v1759 = vld [vmem:[%s1369 + $0x22] sm:$0xff]
      %v1760 = vld [vmem:[%s1369 + $0x32] sm:$0xff]
      %v1761 = vld [vmem:[%s1369 + $0x3a] sm:$0xff]
      %v1762 = vld [vmem:[%s1369 + $0x4a] sm:$0xff]
      %v1763 = vld [vmem:[%s1369 + $0x52] sm:$0xff]
      %v1764 = vld [vmem:[%s1369 + $0x62] sm:$0xff]
      %v1765 = vld [vmem:[%s1369 + $0x6a] sm:$0xff]
      %v1766 = vld [vmem:[%s1369 + $0x7a] sm:$0xff]
      %v1767 = vld [vmem:[%s1369 + $0x82] sm:$0xff]
      %v1768 = vld [vmem:[%s1369 + $0x92] sm:$0xff]
      %v1769 = vld [vmem:[%s1369 + $0x9a] sm:$0xff]
      %v1770 = vld [vmem:[%s1369 + $0xaa] sm:$0xff]
      %v1771 = vld [vmem:[%s1369 + $0xb2] sm:$0xff]
      %v1772 = vld [vmem:[%s1369 + $0xc2] sm:$0xff]
      %v1773 = vld [vmem:[%s1369 + $0xca] sm:$0xff]
      %v1774 = vld [vmem:[%s1369 + $0xda] sm:$0xff]
      %v1775 = vld [vmem:[%s1369 + $0xe2] sm:$0xff]
      %v1776 = vld [vmem:[%s1369 + $0xf2] sm:$0xff]
      %v1777 = vld [vmem:[%s1369 + $0xfa] sm:$0xff]
      %v1778 = vld [vmem:[%s1369 + $0x10a] sm:$0xff]
      %v1779 = vld [vmem:[%s1369 + $0x112] sm:$0xff]
      %v1780 = vld [vmem:[%s1369 + $0x122] sm:$0xff]
      %v1781 = vld [vmem:[%s1369 + $0x12a] sm:$0xff]
      %v1782 = vld [vmem:[%s1369 + $0x13a] sm:$0xff]
      %v1783 = vld [vmem:[%s1369 + $0x142] sm:$0xff]
      %v1784 = vld [vmem:[%s1369 + $0x152] sm:$0xff]
      %v1785 = vld [vmem:[%s1369 + $0x15a] sm:$0xff]
      %v1786 = vld [vmem:[%s1369 + $0x16a] sm:$0xff]
      %v1787 = vld [vmem:[%s1369 + $0x172] sm:$0xff]
      %1820 = vrot.lane.b32.xlu0 %v1756, 32
      %v1821 = vpop.permute.xlu0 %1820
      %1822 = vrot.lane.b32.xlu0 %v1757, 32
      %v1823 = vpop.permute.xlu0 %1822
      %1824 = vrot.lane.b32.xlu0 %v1758, 32
      %v1825 = vpop.permute.xlu0 %1824
      %1826 = vrot.lane.b32.xlu0 %v1759, 32
      %v1827 = vpop.permute.xlu0 %1826
      %1828 = vrot.lane.b32.xlu0 %v1760, 32
      %v1829 = vpop.permute.xlu0 %1828
      %1830 = vrot.lane.b32.xlu0 %v1761, 32
      %v1831 = vpop.permute.xlu0 %1830
      %1832 = vrot.lane.b32.xlu0 %v1762, 32
      %v1833 = vpop.permute.xlu0 %1832
      %1834 = vrot.lane.b32.xlu0 %v1763, 32
      %v1835 = vpop.permute.xlu0 %1834
      %1836 = vrot.lane.b32.xlu0 %v1764, 32
      %v1837 = vpop.permute.xlu0 %1836
      %1838 = vrot.lane.b32.xlu0 %v1765, 32
      %v1839 = vpop.permute.xlu0 %1838
      %1840 = vrot.lane.b32.xlu0 %v1766, 32
      %v1841 = vpop.permute.xlu0 %1840
      %1842 = vrot.lane.b32.xlu0 %v1767, 32
      %v1843 = vpop.permute.xlu0 %1842
      %1844 = vrot.lane.b32.xlu0 %v1768, 32
      %v1845 = vpop.permute.xlu0 %1844
      %1846 = vrot.lane.b32.xlu0 %v1769, 32
      %v1847 = vpop.permute.xlu0 %1846
      %1848 = vrot.lane.b32.xlu0 %v1770, 32
      %v1849 = vpop.permute.xlu0 %1848
      %1850 = vrot.lane.b32.xlu0 %v1771, 32
      %v1851 = vpop.permute.xlu0 %1850
      %1852 = vrot.lane.b32.xlu0 %v1772, 32
      %v1853 = vpop.permute.xlu0 %1852
      %1854 = vrot.lane.b32.xlu0 %v1773, 32
      %v1855 = vpop.permute.xlu0 %1854
      %1856 = vrot.lane.b32.xlu0 %v1774, 32
      %v1857 = vpop.permute.xlu0 %1856
      %1858 = vrot.lane.b32.xlu0 %v1775, 32
      %v1859 = vpop.permute.xlu0 %1858
      %1860 = vrot.lane.b32.xlu0 %v1776, 32
      %v1861 = vpop.permute.xlu0 %1860
      %1862 = vrot.lane.b32.xlu0 %v1777, 32
      %v1863 = vpop.permute.xlu0 %1862
      %1864 = vrot.lane.b32.xlu0 %v1778, 32
      %v1865 = vpop.permute.xlu0 %1864
      %1866 = vrot.lane.b32.xlu0 %v1779, 32
      %v1867 = vpop.permute.xlu0 %1866
      %1868 = vrot.lane.b32.xlu0 %v1780, 32
      %v1869 = vpop.permute.xlu0 %1868
      %1870 = vrot.lane.b32.xlu0 %v1781, 32
      %v1871 = vpop.permute.xlu0 %1870
      %1872 = vrot.lane.b32.xlu0 %v1782, 32
      %v1873 = vpop.permute.xlu0 %1872
      %1874 = vrot.lane.b32.xlu0 %v1783, 32
      %v1875 = vpop.permute.xlu0 %1874
      %1876 = vrot.lane.b32.xlu0 %v1784, 32
      %v1877 = vpop.permute.xlu0 %1876
      %1878 = vrot.lane.b32.xlu0 %v1785, 32
      %v1879 = vpop.permute.xlu0 %1878
      %1880 = vrot.lane.b32.xlu0 %v1786, 32
      %v1881 = vpop.permute.xlu0 %1880
      %1882 = vrot.lane.b32.xlu0 %v1787, 32
      %v1883 = vpop.permute.xlu0 %1882
      %vm1916 = vcmask 294144
      %1917 = vst.msk [vmem:[#allocation3] sm:$0xff] %vm1916, %v1821
      %1918 = vst.msk [vmem:[#allocation3 + $0x8] sm:$0xff] %vm1916, %v1823
      %1919 = vst.msk [vmem:[#allocation3 + $0x10] sm:$0xff] %vm1916, %v1825
      %1920 = vst.msk [vmem:[#allocation3 + $0x18] sm:$0xff] %vm1916, %v1827
      %1921 = vst.msk [vmem:[#allocation3 + $0x20] sm:$0xff] %vm1916, %v1829
      %1922 = vst.msk [vmem:[#allocation3 + $0x28] sm:$0xff] %vm1916, %v1831
      %1923 = vst.msk [vmem:[#allocation3 + $0x30] sm:$0xff] %vm1916, %v1833
      %1924 = vst.msk [vmem:[#allocation3 + $0x38] sm:$0xff] %vm1916, %v1835
      %1925 = vst.msk [vmem:[#allocation3 + $0x40] sm:$0xff] %vm1916, %v1837
      %1926 = vst.msk [vmem:[#allocation3 + $0x48] sm:$0xff] %vm1916, %v1839
      %1927 = vst.msk [vmem:[#allocation3 + $0x50] sm:$0xff] %vm1916, %v1841
      %1928 = vst.msk [vmem:[#allocation3 + $0x58] sm:$0xff] %vm1916, %v1843
      %1929 = vst.msk [vmem:[#allocation3 + $0x60] sm:$0xff] %vm1916, %v1845
      %1930 = vst.msk [vmem:[#allocation3 + $0x68] sm:$0xff] %vm1916, %v1847
      %1931 = vst.msk [vmem:[#allocation3 + $0x70] sm:$0xff] %vm1916, %v1849
      %1932 = vst.msk [vmem:[#allocation3 + $0x78] sm:$0xff] %vm1916, %v1851
      %1933 = vst.msk [vmem:[#allocation3 + $0x80] sm:$0xff] %vm1916, %v1853
      %1934 = vst.msk [vmem:[#allocation3 + $0x88] sm:$0xff] %vm1916, %v1855
      %1935 = vst.msk [vmem:[#allocation3 + $0x90] sm:$0xff] %vm1916, %v1857
      %1936 = vst.msk [vmem:[#allocation3 + $0x98] sm:$0xff] %vm1916, %v1859
      %1937 = vst.msk [vmem:[#allocation3 + $0xa0] sm:$0xff] %vm1916, %v1861
      %1938 = vst.msk [vmem:[#allocation3 + $0xa8] sm:$0xff] %vm1916, %v1863
      %1939 = vst.msk [vmem:[#allocation3 + $0xb0] sm:$0xff] %vm1916, %v1865
      %1940 = vst.msk [vmem:[#allocation3 + $0xb8] sm:$0xff] %vm1916, %v1867
      %1941 = vst.msk [vmem:[#allocation3 + $0xc0] sm:$0xff] %vm1916, %v1869
      %1942 = vst.msk [vmem:[#allocation3 + $0xc8] sm:$0xff] %vm1916, %v1871
      %1943 = vst.msk [vmem:[#allocation3 + $0xd0] sm:$0xff] %vm1916, %v1873
      %1944 = vst.msk [vmem:[#allocation3 + $0xd8] sm:$0xff] %vm1916, %v1875
      %1945 = vst.msk [vmem:[#allocation3 + $0xe0] sm:$0xff] %vm1916, %v1877
      %1946 = vst.msk [vmem:[#allocation3 + $0xe8] sm:$0xff] %vm1916, %v1879
      %1947 = vst.msk [vmem:[#allocation3 + $0xf0] sm:$0xff] %vm1916, %v1881
      %1948 = vst.msk [vmem:[#allocation3 + $0xf8] sm:$0xff] %vm1916, %v1883
      %v1949 = vld [vmem:[#allocation3] sm:$0xff]
      %v1950 = vld [vmem:[#allocation3 + $0x8] sm:$0xff]
      %v1951 = vld [vmem:[#allocation3 + $0x10] sm:$0xff]
      %v1952 = vld [vmem:[#allocation3 + $0x18] sm:$0xff]
      %v1953 = vld [vmem:[#allocation3 + $0x20] sm:$0xff]
      %v1954 = vld [vmem:[#allocation3 + $0x28] sm:$0xff]
      %v1955 = vld [vmem:[#allocation3 + $0x30] sm:$0xff]
      %v1956 = vld [vmem:[#allocation3 + $0x38] sm:$0xff]
      %v1957 = vld [vmem:[#allocation3 + $0x40] sm:$0xff]
      %v1958 = vld [vmem:[#allocation3 + $0x48] sm:$0xff]
      %v1959 = vld [vmem:[#allocation3 + $0x50] sm:$0xff]
      %v1960 = vld [vmem:[#allocation3 + $0x58] sm:$0xff]
      %v1961 = vld [vmem:[#allocation3 + $0x60] sm:$0xff]
      %v1962 = vld [vmem:[#allocation3 + $0x68] sm:$0xff]
      %v1963 = vld [vmem:[#allocation3 + $0x70] sm:$0xff]
      %v1964 = vld [vmem:[#allocation3 + $0x78] sm:$0xff]
      %v1965 = vld [vmem:[#allocation3 + $0x80] sm:$0xff]
      %v1966 = vld [vmem:[#allocation3 + $0x88] sm:$0xff]
      %v1967 = vld [vmem:[#allocation3 + $0x90] sm:$0xff]
      %v1968 = vld [vmem:[#allocation3 + $0x98] sm:$0xff]
      %v1969 = vld [vmem:[#allocation3 + $0xa0] sm:$0xff]
      %v1970 = vld [vmem:[#allocation3 + $0xa8] sm:$0xff]
      %v1971 = vld [vmem:[#allocation3 + $0xb0] sm:$0xff]
      %v1972 = vld [vmem:[#allocation3 + $0xb8] sm:$0xff]
      %v1973 = vld [vmem:[#allocation3 + $0xc0] sm:$0xff]
      %v1974 = vld [vmem:[#allocation3 + $0xc8] sm:$0xff]
      %v1975 = vld [vmem:[#allocation3 + $0xd0] sm:$0xff]
      %v1976 = vld [vmem:[#allocation3 + $0xd8] sm:$0xff]
      %v1977 = vld [vmem:[#allocation3 + $0xe0] sm:$0xff]
      %v1978 = vld [vmem:[#allocation3 + $0xe8] sm:$0xff]
      %v1979 = vld [vmem:[#allocation3 + $0xf0] sm:$0xff]
      %v1980 = vld [vmem:[#allocation3 + $0xf8] sm:$0xff]
      %v1981 = vpack.c.bf16 %v1950, %v1949
      %v1982 = vpack.c.bf16 %v1952, %v1951
      %v1983 = vpack.c.bf16 %v1954, %v1953
      %v1984 = vpack.c.bf16 %v1956, %v1955
      %v1985 = vpack.c.bf16 %v1958, %v1957
      %v1986 = vpack.c.bf16 %v1960, %v1959
      %v1987 = vpack.c.bf16 %v1962, %v1961
      %v1988 = vpack.c.bf16 %v1964, %v1963
      %v1989 = vpack.c.bf16 %v1966, %v1965
      %v1990 = vpack.c.bf16 %v1968, %v1967
      %v1991 = vpack.c.bf16 %v1970, %v1969
      %v1992 = vpack.c.bf16 %v1972, %v1971
      %v1993 = vpack.c.bf16 %v1974, %v1973
      %v1994 = vpack.c.bf16 %v1976, %v1975
      %v1995 = vpack.c.bf16 %v1978, %v1977
      %v1996 = vpack.c.bf16 %v1980, %v1979
      %v1997 = vld [vmem:[%s1] sm:$0xf]
      %v1998 = vld [vmem:[%s2] sm:$0xff]
      %2000 = vset.pattern.permute.xlu0 0
      %2001 = vperm.xlu0 %2000, %v1998
      %v2002 = vpop.permute.xlu0 %2001
      %vm2004 = vcmask 293888
      %v2006 = vsel %vm2004, %v1997, 0
      %v2009 = vsel %vm2004, %v1981, 0
      %v2012 = vsel %vm2004, %v1982, 0
      %v2015 = vsel %vm2004, %v1983, 0
      %v2018 = vsel %vm2004, %v1984, 0
      %v2021 = vsel %vm2004, %v1985, 0
      %v2024 = vsel %vm2004, %v1986, 0
      %v2027 = vsel %vm2004, %v1987, 0
      %v2030 = vsel %vm2004, %v1988, 0
      %v2033 = vsel %vm2004, %v1989, 0
      %v2036 = vsel %vm2004, %v1990, 0
      %v2039 = vsel %vm2004, %v1991, 0
      %v2042 = vsel %vm2004, %v1992, 0
      %v2045 = vsel %vm2004, %v1993, 0
      %v2048 = vsel %vm2004, %v1994, 0
      %v2051 = vsel %vm2004, %v1995, 0
      %v2054 = vsel %vm2004, %v1996, 0
      %2056 = vmatprep.subr.bf16.mxu0 0
      %2057 = vmatpush1.bf16.xpose.msra.mxu0 %v2009
      %2058 = vmatprep.subr.bf16.mxu0 0
      %2059 = vmatpush1.bf16.xpose.msra.mxu0 %v2012
      %2060 = vmatprep.subr.bf16.mxu0 0
      %2061 = vmatpush1.bf16.xpose.msra.mxu0 %v2015
      %2062 = vmatprep.subr.bf16.mxu0 0
      %2063 = vmatpush1.bf16.xpose.msra.mxu0 %v2018
      %2064 = vmatprep.subr.bf16.mxu0 0
      %2065 = vmatpush1.bf16.xpose.msra.mxu0 %v2021
      %2066 = vmatprep.subr.bf16.mxu0 0
      %2067 = vmatpush1.bf16.xpose.msra.mxu0 %v2024
      %2068 = vmatprep.subr.bf16.mxu0 0
      %2069 = vmatpush1.bf16.xpose.msra.mxu0 %v2027
      %2070 = vmatprep.subr.bf16.mxu0 0
      %2071 = vmatpush1.bf16.xpose.msra.mxu0 %v2030
      %2072 = vmatprep.subr.bf16.mxu0 0
      %2073 = vmatpush1.bf16.xpose.msra.mxu0 %v2033
      %2074 = vmatprep.subr.bf16.mxu0 0
      %2075 = vmatpush1.bf16.xpose.msra.mxu0 %v2036
      %2076 = vmatprep.subr.bf16.mxu0 0
      %2077 = vmatpush1.bf16.xpose.msra.mxu0 %v2039
      %2078 = vmatprep.subr.bf16.mxu0 0
      %2079 = vmatpush1.bf16.xpose.msra.mxu0 %v2042
      %2080 = vmatprep.subr.bf16.mxu0 0
      %2081 = vmatpush1.bf16.xpose.msra.mxu0 %v2045
      %2082 = vmatprep.subr.bf16.mxu0 0
      %2083 = vmatpush1.bf16.xpose.msra.mxu0 %v2048
      %2084 = vmatprep.subr.bf16.mxu0 0
      %2085 = vmatpush1.bf16.xpose.msra.mxu0 %v2051
      %2086 = vmatprep.subr.bf16.mxu0 0
      %2087 = vmatpush1.bf16.xpose.msra.mxu0 %v2054
      %2088 = vmatprep.mubr.bf16.mxu0 0
      %2089 = vmatmul.mubr.bf16.gmra.mrb[0].mxu0 %v2006
      %v2090 = vpop.f32.mrb[0].mxu0
      %v2091 = vadd.f32 %v2002, %v2090
      %v2092 = vpop.f32.mrb[0].mxu0
      %v2093 = vadd.f32 %v2002, %v2092
      %v2094 = vpop.f32.mrb[0].mxu0
      %v2095 = vpop.f32.mrb[0].mxu0
      %2096 = vdwg.mxu0
      %s2097 = smul.u32 %s16, 2
      %s2098 = smul.addr %s2097, 8
      %s2099 = scalar_lea.vmem %s5, %s2098
      %2100 = vst [vmem:[%s2099] sm:$0xff] %v2091
      %2101 = vst [vmem:[%s2099 + $0x8] sm:$0xff] %v2093
      %v2102 = vld [vmem:[#allocation4] sm:$0xff]
      %v2103 = vadd.f32 %v2091, %v2093
      %2104 = vadd.xlane.f32.xlu0 %v2103
      %v2105 = vpop.xlane.xlu0 %2104
      %v2106 = vadd.f32 %v2102, %v2105
      %vm2107 = vcmask 7168
      %2108 = vst.msk [vmem:[#allocation4] sm:$0xff] %vm2107, %v2106
      %v2109 = vld [vmem:[#allocation5] sm:$0xff]
      %v2110 = vmul.f32 %v2091, %v2091
      %v2111 = vmul.f32 %v2093, %v2093
      %v2112 = vadd.f32 %v2110, %v2111
      %2113 = vadd.xlane.f32.xlu0 %v2112
      %v2114 = vpop.xlane.xlu0 %2113
      %v2115 = vadd.f32 %v2109, %v2114
      %2116 = vst.msk [vmem:[#allocation5] sm:$0xff] %vm2107, %v2115
      %p2117 = scmp.eq.s32.totalorder %s16, 1
      // Predicated region
      $region45: #{conv_block_forward.1} parent=39 // pred_check
        %p2118 = pneg %p2117
      $region46: #{conv_block_forward.1} parent=39 // pred_check_branch
        %2120 = sbr.rel (%p2118) target = $region48
      $region47: #{conv_block_forward.1} parent=39 // pred_region
        %v2121 = vld [vmem:[#allocation4] sm:$0xff]
        %v2122 = vmul.f32 %v2121, 0.001953125
        %v2123 = vld [vmem:[#allocation5] sm:$0xff]
        %v2124 = vmul.f32 %v2123, 0.001953125
        %v2125 = vmul.f32 %v2122, %v2122
        %v2126 = vsub.f32 %v2124, %v2125
        %v2127 = vmax.f32 %v2126, 0.0
        %v2128 = vld [vmem:[%s3] sm:$0xff]
        %v2129 = vadd.f32 %v2127, 1e-05
        %v2130 = vrsqrt.pop %v2129
        %v2131 = vmul.f32 %v2128, %v2130
        %v2132 = vld [vmem:[%s4] sm:$0xff]
        %v2133 = vmul.f32 %v2122, %v2131
        %v2134 = vsub.f32 %v2132, %v2133
        %v2135 = vld [vmem:[%s5] sm:$0xff]
        %v2136 = vld [vmem:[%s5 + $0x8] sm:$0xff]
        %v2137 = vld [vmem:[%s5 + $0x10] sm:$0xff]
        %v2138 = vld [vmem:[%s5 + $0x18] sm:$0xff]
        %2140 = vset.pattern.permute.xlu0 0
        %2141 = vperm.xlu0 %2140, %v2131
        %v2142 = vpop.permute.xlu0 %2141
        %v2144 = vmul.f32 %v2135, %v2142
        %v2145 = vmul.f32 %v2136, %v2142
        %v2146 = vmul.f32 %v2137, %v2142
        %v2147 = vmul.f32 %v2138, %v2142
        %2149 = vset.pattern.permute.xlu0 0
        %2150 = vperm.xlu0 %2149, %v2134
        %v2151 = vpop.permute.xlu0 %2150
        %v2153 = vadd.f32 %v2144, %v2151
        %v2154 = vadd.f32 %v2145, %v2151
        %v2155 = vadd.f32 %v2146, %v2151
        %v2156 = vadd.f32 %v2147, %v2151
        %v2157 = vmax.f32 %v2153, 0.0
        %v2158 = vmax.f32 %v2154, 0.0
        %v2159 = vmax.f32 %v2155, 0.0
        %v2160 = vmax.f32 %v2156, 0.0
        %2161 = vst [vmem:[%s5] sm:$0xff] %v2157
        %2162 = vst [vmem:[%s5 + $0x8] sm:$0xff] %v2158
        %2163 = vst [vmem:[%s5 + $0x10] sm:$0xff] %v2159
        %2164 = vst [vmem:[%s5 + $0x18] sm:$0xff] %v2160
      $region48: #{conv_block_forward.1} parent=39 // pred_fallthru
        _
      // Predicated region
      $region49: #{conv_block_forward.1} parent=39 // pred_check
        %p2165 = pneg %p139
      $region50: #{conv_block_forward.1} parent=39 // pred_check_branch
        %2167 = sbr.rel (%p2165) target = $region52
      $region51: #{conv_block_forward.1} parent=39 // pred_region
        _
      $region52: #{conv_block_forward.1} parent=39 // pred_fallthru
        _
      // Predicated region
      $region53: #{conv_block_forward.1} parent=39 // pred_check
        %p2168 = pneg %p139
      $region54: #{conv_block_forward.1} parent=39 // pred_check_branch
        %2170 = sbr.rel (%p2168) target = $region56
      $region55: #{conv_block_forward.1} parent=39 // pred_region
        _
      $region56: #{conv_block_forward.1} parent=39 // pred_fallthru
        _
    $region40: #{conv_block_forward.1} parent=5 // pred_fallthru
      _
    %p2171 = scmp.le.s32.totalorder 2, %s11
    // Predicated region
    $region57: #{conv_block_forward.1} parent=5 // pred_check
      %p2172 = pneg %p2171
    $region58: #{conv_block_forward.1} parent=5 // pred_check_branch
      %2174 = sbr.rel (%p2172) target = $region60
    $region59: #{conv_block_forward.1} parent=5 // pred_region
      %s2175 = ssub.s32 %s11, 2
    $region60: #{conv_block_forward.1} parent=5 // pred_fallthru
      _
  $region6: #{conv_block_forward.1} parent=0 // loop_footer
    %s15 = sadd.s32 1, %s11
  $region7: #{conv_block_forward.1} parent=0 // loop_footer_branch
    %10 = sbr.rel target = $region3
  $region8: #{conv_block_forward.1} parent=0 // loop_exit
    _

</llo_original>
